<compile_context>
chip_gen: v7x
topology: tpu7x:2x2x1
jax: 0.10.0
libtpu: 0.0.40
codegen_flags: <defaults>
</compile_context>

<pallas_src>
import functools

import jax
import jax.numpy as jnp
import numpy as np
from jax import lax
from jax.experimental import pallas as pl
from jax.experimental.pallas import tpu as pltpu

HIDDEN = 64  # per-branch conv width fixed by the architecture (Conv1d(ch, 64, ...))


# ----------------------------------------------------------------------------
# Fused Pallas kernel: one batch element per grid step, everything VMEM-resident
# ----------------------------------------------------------------------------
def _fused_forward_kernel(x_ref, dmats_ref, w1_ref, b1_ref,
                          wmid_ref, bmid_ref, wfin_ref, bfin_ref, o_ref,
                          *, hidden):
    """Whole network for one batch element (rows = length L, cols = channels).

    x_ref    : (L, C)      f32   time-domain input (length-major)
    dmats_ref: (2, L, L)   f32   [D, D^T] orthonormal DCT-II and its inverse
    w1_ref   : (6C, 2H)    bf16  layer-1 taps [t_prev,t_ctr,t_next,f_prev,f_ctr,f_next]
    b1_ref   : (1, 2H)     f32
    wmid_ref : (3, 6H, 2H) bf16  layers 2..4; rows = [prev | ctr | next] block-diag
    bmid_ref : (3, 1, 2H)  f32
    wfin_ref : (6H, C)     bf16  final conv; rows = [prev | ctr | next]
    bfin_ref : (1, C)      f32
    o_ref    : (L, C)      f32
    """
    f32 = jnp.float32
    bf16 = jnp.bfloat16

    def bdot(a, w):
        # bf16 x bf16 MXU matmul with f32 accumulation.
        return jnp.dot(a.astype(bf16), w, preferred_element_type=f32)

    def shift(a, up):
        # up=True : prev tap (row i <- row i-1, zero at row 0)
        # up=False: next tap (row i <- row i+1, zero at row L-1)
        n = a.shape[0]
        rolled = pltpu.roll(a, 1 if up else n - 1, axis=0)
        row = lax.broadcasted_iota(jnp.int32, a.shape, 0)
        boundary = 0 if up else n - 1
        return jnp.where(row == boundary, 0.0, rolled)

    x = x_ref[...]                                    # (L, C)
    d = dmats_ref[0]                                  # (L, L)  DCT
    dt = dmats_ref[1]                                 # (L, L)  IDCT (= D^T)

    # Frequency-branch input: orthonormal DCT along the length axis (kept f32).
    xf = jnp.dot(d, x, preferred_element_type=f32)

    # ---- layer 1: both branches, all 3 taps -> one (L, 6C) @ (6C, 2H) matmul
    a_in = jnp.concatenate(
        [shift(x, True), x, shift(x, False),
         shift(xf, True), xf, shift(xf, False)], axis=-1)
    a = jnp.maximum(bdot(a_in, w1_ref[...]) + b1_ref[...], 0.0)

    # ---- layers 2..4: one (L, 6H) @ (6H, 2H) block-diagonal matmul per layer
    for l in range(wmid_ref.shape[0]):
        a_in = jnp.concatenate([shift(a, True), a, shift(a, False)], axis=-1)
        a = jnp.maximum(bdot(a_in, wmid_ref[l]) + bmid_ref[l], 0.0)

    # ---- IDCT applied to all lanes, kept only for the frequency half --------
    a_idct = jnp.dot(dt, a, preferred_element_type=f32)
    col = lax.broadcasted_iota(jnp.int32, a.shape, 1)
    a = jnp.where(col < hidden, a, a_idct)

    # ---- final conv (no activation) ------------------------------------------
    a_in = jnp.concatenate([shift(a, True), a, shift(a, False)], axis=-1)
    y = bdot(a_in, wfin_ref[...]) + bfin_ref[...]
    o_ref[...] = y.astype(o_ref.dtype)


# ----------------------------------------------------------------------------
# Parameter construction (deterministic, synthetic) + BN folding + branch merge
# ----------------------------------------------------------------------------
def _dct_matrix_np(L):
    """Orthonormal DCT-II matrix D with dct(x, norm='ortho') = D @ x (last axis)."""
    n = np.arange(L)
    k = np.arange(L)[:, None]
    D = np.sqrt(2.0 / L) * np.cos(np.pi * (n + 0.5) * k / L)
    D[0, :] *= 1.0 / np.sqrt(2.0)
    return D.astype(np.float32)


def _make_conv_bn_params(key, cin, cout):
    kw, kb, kg, kbe, km, kv = jax.random.split(key, 6)
    w = 0.1 * jax.random.normal(kw, (cout, cin, 3), jnp.float32)   # torch (O, I, K)
    b = 0.1 * jax.random.normal(kb, (cout,), jnp.float32)
    gamma = 1.0 + 0.1 * jax.random.normal(kg, (cout,), jnp.float32)
    beta = 0.1 * jax.random.normal(kbe, (cout,), jnp.float32)
    mean = 0.05 * jax.random.normal(km, (cout,), jnp.float32)
    var = 1.0 + 0.2 * jax.random.uniform(kv, (cout,), jnp.float32)
    return dict(w=w, b=b, gamma=gamma, beta=beta, mean=mean, var=var)


def _fold_bn(p, eps=1e-5):
    """Fold eval-mode BatchNorm into conv weight/bias; returns (3, Cin, Cout), (Cout,)."""
    scale = p["gamma"] / jnp.sqrt(p["var"] + eps)
    w_fold = jnp.transpose(p["w"], (2, 1, 0)) * scale[None, None, :]
    b_fold = (p["b"] - p["mean"]) * scale + p["beta"]
    return w_fold, b_fold


def make_params(channel_num=4, seq_len=16, seed=0):
    H = HIDDEN
    key = jax.random.PRNGKey(seed)
    keys = jax.random.split(key, 16)
    ki = iter(keys)

    def branch():
        layers, cin = [], channel_num
        for _ in range(4):
            layers.append(_make_conv_bn_params(next(ki), cin, H))
            cin = H
        return layers

    t_raw = branch()
    f_raw = branch()

    kfw, kfb = jax.random.split(next(ki))
    final_w = 0.1 * jax.random.normal(kfw, (channel_num, 2 * H, 3), jnp.float32)
    final_b = 0.1 * jax.random.normal(kfb, (channel_num,), jnp.float32)

    t_fold = [_fold_bn(p) for p in t_raw]
    f_fold = [_fold_bn(p) for p in f_raw]

    # --- layer 1: columns [0,H)=time branch, [H,2H)=frequency branch ---------
    wt, bt = t_fold[0]                           # (3, C, H), (H,)
    wf, bf = f_fold[0]
    zeros1 = jnp.zeros_like(wt)
    w1 = jnp.concatenate(
        [jnp.concatenate([wt, zeros1], axis=-1).reshape(3 * channel_num, 2 * H),
         jnp.concatenate([zeros1, wf], axis=-1).reshape(3 * channel_num, 2 * H)],
        axis=0)                                                      # (6C, 2H)
    b1 = jnp.concatenate([bt, bf]).reshape(1, 2 * H)

    # --- layers 2..4: per-tap (2H, 2H) block-diag, taps stacked along rows ---
    wmid, bmid = [], []
    for l in range(1, 4):
        wt, bt = t_fold[l]                       # (3, H, H)
        wf, bf = f_fold[l]
        zh = jnp.zeros((H, H), jnp.float32)
        taps = []
        for k in range(3):
            top = jnp.concatenate([wt[k], zh], axis=-1)              # (H, 2H)
            bot = jnp.concatenate([zh, wf[k]], axis=-1)              # (H, 2H)
            taps.append(jnp.concatenate([top, bot], axis=0))         # (2H, 2H)
        wmid.append(jnp.concatenate(taps, axis=0))                   # (6H, 2H)
        bmid.append(jnp.concatenate([bt, bf]).reshape(1, 2 * H))
    wmid = jnp.stack(wmid)                                           # (3, 6H, 2H)
    bmid = jnp.stack(bmid)                                           # (3, 1, 2H)

    # --- final conv: taps stacked along rows ----------------------------------
    wfin = jnp.transpose(final_w, (2, 1, 0)).reshape(6 * H, channel_num)  # (6H, C)
    bfin = final_b.reshape(1, channel_num)

    D = _dct_matrix_np(seq_len)
    dmats = jnp.asarray(np.stack([D, D.T]))                          # (2, L, L)

    return dict(
        # raw params for the independent reference path
        t_raw=t_raw, f_raw=f_raw,
        final_w_raw=final_w, final_b_raw=final_b,
        dct_mat=jnp.asarray(D),
        # fused-kernel params (weights quantised to bf16, biases kept f32)
        dmats=dmats,
        w1=w1.astype(jnp.bfloat16), b1=b1,
        wmid=wmid.astype(jnp.bfloat16), bmid=bmid,
        wfin=wfin.astype(jnp.bfloat16), bfin=bfin,
    )


# ----------------------------------------------------------------------------
# Forward pass: one pallas_call, grid over batch
# ----------------------------------------------------------------------------
def forward(x_ncl, params):
    """x_ncl: (B, C, L) like the PyTorch module; returns (B, C, L)."""
    B, C, L = x_ncl.shape
    H2 = 2 * HIDDEN
    x_blc = jnp.transpose(x_ncl, (0, 2, 1)).astype(jnp.float32)      # (B, L, C)

    args = (x_blc, params["dmats"], params["w1"], params["b1"],
            params["wmid"], params["bmid"], params["wfin"], params["bfin"])

    def const_spec(a):
        return pl.BlockSpec(a.shape, lambda b, _n=a.ndim: (0,) * _n)

    in_specs = ([pl.BlockSpec((None, L, C), lambda b: (b, 0, 0))]
                + [const_spec(a) for a in args[1:]])
    out_specs = pl.BlockSpec((None, L, C), lambda b: (b, 0, 0))

    # Advisory cost estimate (matmul flops + bytes touched once).
    per_step_flops = 2 * (L * L * C                     # DCT
                          + L * 6 * C * H2              # layer 1
                          + 3 * L * 3 * H2 * H2         # layers 2..4
                          + L * L * H2                  # IDCT
                          + L * 3 * H2 * C)             # final conv
    bytes_accessed = (sum(int(a.size) * a.dtype.itemsize for a in args)
                      + B * L * C * 4)
    cost = pl.CostEstimate(flops=B * per_step_flops, transcendentals=0,
                           bytes_accessed=bytes_accessed)

    kernel = functools.partial(_fused_forward_kernel, hidden=HIDDEN)
    y_blc = pl.pallas_call(
        kernel,
        out_shape=jax.ShapeDtypeStruct((B, L, C), jnp.float32),
        grid=(B,),
        in_specs=in_specs,
        out_specs=out_specs,
        compiler_params=pltpu.CompilerParams(dimension_semantics=("parallel",)),
        cost_estimate=cost,
    )(*args)

    return jnp.transpose(y_blc, (0, 2, 1))


# ----------------------------------------------------------------------------
# Pure-JAX reference (independent: lax.conv + explicit BN + einsum DCT/IDCT)
# ----------------------------------------------------------------------------
def _ref_conv1d(x_ncl, w_oik, b):
    dn = lax.conv_dimension_numbers(x_ncl.shape, w_oik.shape, ("NCH", "OIH", "NCH"))
    y = lax.conv_general_dilated(x_ncl, w_oik, window_strides=(1,), padding=((1, 1),),
                                 dimension_numbers=dn,
                                 precision=lax.Precision.HIGHEST)
    return y + b[None, :, None]


def _ref_block(x_ncl, p, eps=1e-5):
    y = _ref_conv1d(x_ncl, p["w"], p["b"])
    y = (y - p["mean"][None, :, None]) / jnp.sqrt(p["var"][None, :, None] + eps)
    y = y * p["gamma"][None, :, None] + p["beta"][None, :, None]
    return jnp.maximum(y, 0.0)


def reference_forward(x_ncl, params):
    D = params["dct_mat"]
    t = x_ncl
    for p in params["t_raw"]:
        t = _ref_block(t, p)
    # DCT along the last (length) axis: X[k] = sum_n D[k, n] x[n]
    f = jnp.einsum("kn,bcn->bck", D, x_ncl, precision=lax.Precision.HIGHEST)
    for p in params["f_raw"]:
        f = _ref_block(f, p)
    # IDCT (inverse of orthonormal DCT-II) = D^T applied along the last axis
    f = jnp.einsum("kn,bck->bcn", D, f, precision=lax.Precision.HIGHEST)
    cat = jnp.concatenate([t, f], axis=1)
    return _ref_conv1d(cat, params["final_w_raw"], params["final_b_raw"])


# ----------------------------------------------------------------------------
if __name__ == "__main__":
    B, C, L = 2, 4, 16
    key = jax.random.PRNGKey(0)
    x = jax.random.normal(key, (B, C, L), jnp.float32)

    params = make_params(channel_num=C, seq_len=L, seed=0)

    out = jax.block_until_ready(forward(x, params))
    ref = jax.block_until_ready(reference_forward(x, params))

    # bf16 weights/operands in the kernel vs f32 HIGHEST reference -> loosened tolerance.
    np.testing.assert_allclose(np.asarray(out), np.asarray(ref), rtol=5e-2, atol=5e-2)
    assert out.shape == (B, C, L)

    print("KERNEL_OK")
</pallas_src>

<mosaic_0001>
module attributes {stable_mosaic.version = 11 : i64} {
  func.func @_fused_forward_kernel(%arg0: i32, %arg1: memref<1x16x4xf32, #tpu.memory_space<vmem>>, %arg2: memref<2x16x16xf32, #tpu.memory_space<vmem>>, %arg3: memref<24x128xbf16, #tpu.memory_space<vmem>>, %arg4: memref<1x128xf32, #tpu.memory_space<vmem>>, %arg5: memref<3x384x128xbf16, #tpu.memory_space<vmem>>, %arg6: memref<3x1x128xf32, #tpu.memory_space<vmem>>, %arg7: memref<384x4xbf16, #tpu.memory_space<vmem>>, %arg8: memref<1x4xf32, #tpu.memory_space<vmem>>, %arg9: memref<1x16x4xf32, #tpu.memory_space<vmem>>) attributes {dimension_semantics = [#tpu.dimension_semantics<parallel>], iteration_bounds = array<i64: 2>, scalar_prefetch = 0 : i64, scratch_operands = 0 : i64, tpu.core_type = #tpu.core_type<tc>, window_params = [{transform_indices = @transform_0, window_bounds = array<i64: 1, 16, 4>}, {pipeline_mode = #tpu.pipeline_mode<synchronous>, transform_indices = @transform_1, window_bounds = array<i64: 2, 16, 16>}, {pipeline_mode = #tpu.pipeline_mode<synchronous>, transform_indices = @transform_2, window_bounds = array<i64: 24, 128>}, {pipeline_mode = #tpu.pipeline_mode<synchronous>, transform_indices = @transform_3, window_bounds = array<i64: 1, 128>}, {pipeline_mode = #tpu.pipeline_mode<synchronous>, transform_indices = @transform_4, window_bounds = array<i64: 3, 384, 128>}, {pipeline_mode = #tpu.pipeline_mode<synchronous>, transform_indices = @transform_5, window_bounds = array<i64: 3, 1, 128>}, {pipeline_mode = #tpu.pipeline_mode<synchronous>, transform_indices = @transform_6, window_bounds = array<i64: 384, 4>}, {pipeline_mode = #tpu.pipeline_mode<synchronous>, transform_indices = @transform_7, window_bounds = array<i64: 1, 4>}, {transform_indices = @transform_8, window_bounds = array<i64: 1, 16, 4>}]} {
    %c0 = arith.constant 0 : index
    %c0_0 = arith.constant 0 : index
    %c0_1 = arith.constant 0 : index
    %0 = vector.load %arg1[%c0, %c0_0, %c0_1] : memref<1x16x4xf32, #tpu.memory_space<vmem>>, vector<1x16x4xf32>
    %1 = vector.shape_cast %0 : vector<1x16x4xf32> to vector<16x4xf32>
    %c0_2 = arith.constant 0 : index
    %c0_3 = arith.constant 0 : index
    %c0_4 = arith.constant 0 : index
    %2 = vector.load %arg2[%c0_2, %c0_3, %c0_4] : memref<2x16x16xf32, #tpu.memory_space<vmem>>, vector<1x16x16xf32>
    %3 = vector.shape_cast %2 : vector<1x16x16xf32> to vector<16x16xf32>
    %c1 = arith.constant 1 : index
    %c0_5 = arith.constant 0 : index
    %c0_6 = arith.constant 0 : index
    %4 = vector.load %arg2[%c1, %c0_5, %c0_6] : memref<2x16x16xf32, #tpu.memory_space<vmem>>, vector<1x16x16xf32>
    %5 = vector.shape_cast %4 : vector<1x16x16xf32> to vector<16x16xf32>
    %cst = arith.constant dense<0.000000e+00> : vector<16x4xf32>
    %6 = tpu.matmul %3, %1, %cst {dimension_numbers = #tpu.dot_dimension_numbers<[1], [0], [0], [1], [0, 0, 1, 1], [], []>} : vector<16x16xf32>, vector<16x4xf32>, vector<16x4xf32> -> vector<16x4xf32>
    %c1_i32 = arith.constant 1 : i32
    %7 = tpu.dynamic_rotate %1 by %c1_i32 dim 0 : vector<16x4xf32>, i32 -> vector<16x4xf32>
    %8 = tpu.iota {dimensions = array<i32: 0>} : vector<16x4xi32>
    %c0_i32 = arith.constant 0 : i32
    %9 = vector.broadcast %c0_i32 : i32 to vector<16x4xi32>
    %10 = arith.cmpi eq, %8, %9 : vector<16x4xi32>
    %cst_7 = arith.constant 0.000000e+00 : f32
    %11 = vector.broadcast %cst_7 : f32 to vector<16x4xf32>
    %12 = arith.select %10, %11, %7 : vector<16x4xi1>, vector<16x4xf32>
    %c15_i32 = arith.constant 15 : i32
    %13 = tpu.dynamic_rotate %1 by %c15_i32 dim 0 : vector<16x4xf32>, i32 -> vector<16x4xf32>
    %14 = tpu.iota {dimensions = array<i32: 0>} : vector<16x4xi32>
    %c15_i32_8 = arith.constant 15 : i32
    %15 = vector.broadcast %c15_i32_8 : i32 to vector<16x4xi32>
    %16 = arith.cmpi eq, %14, %15 : vector<16x4xi32>
    %cst_9 = arith.constant 0.000000e+00 : f32
    %17 = vector.broadcast %cst_9 : f32 to vector<16x4xf32>
    %18 = arith.select %16, %17, %13 : vector<16x4xi1>, vector<16x4xf32>
    %c1_i32_10 = arith.constant 1 : i32
    %19 = tpu.dynamic_rotate %6 by %c1_i32_10 dim 0 : vector<16x4xf32>, i32 -> vector<16x4xf32>
    %20 = tpu.iota {dimensions = array<i32: 0>} : vector<16x4xi32>
    %c0_i32_11 = arith.constant 0 : i32
    %21 = vector.broadcast %c0_i32_11 : i32 to vector<16x4xi32>
    %22 = arith.cmpi eq, %20, %21 : vector<16x4xi32>
    %cst_12 = arith.constant 0.000000e+00 : f32
    %23 = vector.broadcast %cst_12 : f32 to vector<16x4xf32>
    %24 = arith.select %22, %23, %19 : vector<16x4xi1>, vector<16x4xf32>
    %c15_i32_13 = arith.constant 15 : i32
    %25 = tpu.dynamic_rotate %6 by %c15_i32_13 dim 0 : vector<16x4xf32>, i32 -> vector<16x4xf32>
    %26 = tpu.iota {dimensions = array<i32: 0>} : vector<16x4xi32>
    %c15_i32_14 = arith.constant 15 : i32
    %27 = vector.broadcast %c15_i32_14 : i32 to vector<16x4xi32>
    %28 = arith.cmpi eq, %26, %27 : vector<16x4xi32>
    %cst_15 = arith.constant 0.000000e+00 : f32
    %29 = vector.broadcast %cst_15 : f32 to vector<16x4xf32>
    %30 = arith.select %28, %29, %25 : vector<16x4xi1>, vector<16x4xf32>
    %31 = tpu.concatenate %12, %1, %18, %24, %6, %30 in 1 : vector<16x4xf32>, vector<16x4xf32>, vector<16x4xf32>, vector<16x4xf32>, vector<16x4xf32>, vector<16x4xf32> -> vector<16x24xf32>
    %c0_16 = arith.constant 0 : index
    %c0_17 = arith.constant 0 : index
    %32 = vector.load %arg3[%c0_16, %c0_17] : memref<24x128xbf16, #tpu.memory_space<vmem>>, vector<24x128xbf16>
    %33 = arith.truncf %31 : vector<16x24xf32> to vector<16x24xbf16>
    %cst_18 = arith.constant dense<0.000000e+00> : vector<16x128xf32>
    %34 = tpu.matmul %33, %32, %cst_18 {dimension_numbers = #tpu.dot_dimension_numbers<[1], [0], [0], [1], [0, 0, 1, 1], [], []>} : vector<16x24xbf16>, vector<24x128xbf16>, vector<16x128xf32> -> vector<16x128xf32>
    %c0_19 = arith.constant 0 : index
    %c0_20 = arith.constant 0 : index
    %35 = vector.load %arg4[%c0_19, %c0_20] : memref<1x128xf32, #tpu.memory_space<vmem>>, vector<1x128xf32>
    %36 = vector.broadcast %35 : vector<1x128xf32> to vector<16x128xf32>
    %37 = arith.addf %34, %36 : vector<16x128xf32>
    %cst_21 = arith.constant 0.000000e+00 : f32
    %38 = vector.broadcast %cst_21 : f32 to vector<16x128xf32>
    %39 = arith.maximumf %37, %38 : vector<16x128xf32>
    %c1_i32_22 = arith.constant 1 : i32
    %40 = tpu.dynamic_rotate %39 by %c1_i32_22 dim 0 : vector<16x128xf32>, i32 -> vector<16x128xf32>
    %41 = tpu.iota {dimensions = array<i32: 0>} : vector<16x128xi32>
    %c0_i32_23 = arith.constant 0 : i32
    %42 = vector.broadcast %c0_i32_23 : i32 to vector<16x128xi32>
    %43 = arith.cmpi eq, %41, %42 : vector<16x128xi32>
    %cst_24 = arith.constant 0.000000e+00 : f32
    %44 = vector.broadcast %cst_24 : f32 to vector<16x128xf32>
    %45 = arith.select %43, %44, %40 : vector<16x128xi1>, vector<16x128xf32>
    %c15_i32_25 = arith.constant 15 : i32
    %46 = tpu.dynamic_rotate %39 by %c15_i32_25 dim 0 : vector<16x128xf32>, i32 -> vector<16x128xf32>
    %47 = tpu.iota {dimensions = array<i32: 0>} : vector<16x128xi32>
    %c15_i32_26 = arith.constant 15 : i32
    %48 = vector.broadcast %c15_i32_26 : i32 to vector<16x128xi32>
    %49 = arith.cmpi eq, %47, %48 : vector<16x128xi32>
    %cst_27 = arith.constant 0.000000e+00 : f32
    %50 = vector.broadcast %cst_27 : f32 to vector<16x128xf32>
    %51 = arith.select %49, %50, %46 : vector<16x128xi1>, vector<16x128xf32>
    %52 = tpu.concatenate %45, %39, %51 in 1 : vector<16x128xf32>, vector<16x128xf32>, vector<16x128xf32> -> vector<16x384xf32>
    %c0_28 = arith.constant 0 : index
    %c0_29 = arith.constant 0 : index
    %c0_30 = arith.constant 0 : index
    %53 = vector.load %arg5[%c0_28, %c0_29, %c0_30] : memref<3x384x128xbf16, #tpu.memory_space<vmem>>, vector<1x384x128xbf16>
    %54 = vector.shape_cast %53 : vector<1x384x128xbf16> to vector<384x128xbf16>
    %55 = arith.truncf %52 : vector<16x384xf32> to vector<16x384xbf16>
    %cst_31 = arith.constant dense<0.000000e+00> : vector<16x128xf32>
    %56 = tpu.matmul %55, %54, %cst_31 {dimension_numbers = #tpu.dot_dimension_numbers<[1], [0], [0], [1], [0, 0, 1, 1], [], []>} : vector<16x384xbf16>, vector<384x128xbf16>, vector<16x128xf32> -> vector<16x128xf32>
    %c0_32 = arith.constant 0 : index
    %c0_33 = arith.constant 0 : index
    %c0_34 = arith.constant 0 : index
    %57 = vector.load %arg6[%c0_32, %c0_33, %c0_34] : memref<3x1x128xf32, #tpu.memory_space<vmem>>, vector<1x1x128xf32>
    %58 = vector.shape_cast %57 : vector<1x1x128xf32> to vector<1x128xf32>
    %59 = vector.broadcast %58 : vector<1x128xf32> to vector<16x128xf32>
    %60 = arith.addf %56, %59 : vector<16x128xf32>
    %cst_35 = arith.constant 0.000000e+00 : f32
    %61 = vector.broadcast %cst_35 : f32 to vector<16x128xf32>
    %62 = arith.maximumf %60, %61 : vector<16x128xf32>
    %c1_i32_36 = arith.constant 1 : i32
    %63 = tpu.dynamic_rotate %62 by %c1_i32_36 dim 0 : vector<16x128xf32>, i32 -> vector<16x128xf32>
    %64 = tpu.iota {dimensions = array<i32: 0>} : vector<16x128xi32>
    %c0_i32_37 = arith.constant 0 : i32
    %65 = vector.broadcast %c0_i32_37 : i32 to vector<16x128xi32>
    %66 = arith.cmpi eq, %64, %65 : vector<16x128xi32>
    %cst_38 = arith.constant 0.000000e+00 : f32
    %67 = vector.broadcast %cst_38 : f32 to vector<16x128xf32>
    %68 = arith.select %66, %67, %63 : vector<16x128xi1>, vector<16x128xf32>
    %c15_i32_39 = arith.constant 15 : i32
    %69 = tpu.dynamic_rotate %62 by %c15_i32_39 dim 0 : vector<16x128xf32>, i32 -> vector<16x128xf32>
    %70 = tpu.iota {dimensions = array<i32: 0>} : vector<16x128xi32>
    %c15_i32_40 = arith.constant 15 : i32
    %71 = vector.broadcast %c15_i32_40 : i32 to vector<16x128xi32>
    %72 = arith.cmpi eq, %70, %71 : vector<16x128xi32>
    %cst_41 = arith.constant 0.000000e+00 : f32
    %73 = vector.broadcast %cst_41 : f32 to vector<16x128xf32>
    %74 = arith.select %72, %73, %69 : vector<16x128xi1>, vector<16x128xf32>
    %75 = tpu.concatenate %68, %62, %74 in 1 : vector<16x128xf32>, vector<16x128xf32>, vector<16x128xf32> -> vector<16x384xf32>
    %c1_42 = arith.constant 1 : index
    %c0_43 = arith.constant 0 : index
    %c0_44 = arith.constant 0 : index
    %76 = vector.load %arg5[%c1_42, %c0_43, %c0_44] : memref<3x384x128xbf16, #tpu.memory_space<vmem>>, vector<1x384x128xbf16>
    %77 = vector.shape_cast %76 : vector<1x384x128xbf16> to vector<384x128xbf16>
    %78 = arith.truncf %75 : vector<16x384xf32> to vector<16x384xbf16>
    %cst_45 = arith.constant dense<0.000000e+00> : vector<16x128xf32>
    %79 = tpu.matmul %78, %77, %cst_45 {dimension_numbers = #tpu.dot_dimension_numbers<[1], [0], [0], [1], [0, 0, 1, 1], [], []>} : vector<16x384xbf16>, vector<384x128xbf16>, vector<16x128xf32> -> vector<16x128xf32>
    %c1_46 = arith.constant 1 : index
    %c0_47 = arith.constant 0 : index
    %c0_48 = arith.constant 0 : index
    %80 = vector.load %arg6[%c1_46, %c0_47, %c0_48] : memref<3x1x128xf32, #tpu.memory_space<vmem>>, vector<1x1x128xf32>
    %81 = vector.shape_cast %80 : vector<1x1x128xf32> to vector<1x128xf32>
    %82 = vector.broadcast %81 : vector<1x128xf32> to vector<16x128xf32>
    %83 = arith.addf %79, %82 : vector<16x128xf32>
    %cst_49 = arith.constant 0.000000e+00 : f32
    %84 = vector.broadcast %cst_49 : f32 to vector<16x128xf32>
    %85 = arith.maximumf %83, %84 : vector<16x128xf32>
    %c1_i32_50 = arith.constant 1 : i32
    %86 = tpu.dynamic_rotate %85 by %c1_i32_50 dim 0 : vector<16x128xf32>, i32 -> vector<16x128xf32>
    %87 = tpu.iota {dimensions = array<i32: 0>} : vector<16x128xi32>
    %c0_i32_51 = arith.constant 0 : i32
    %88 = vector.broadcast %c0_i32_51 : i32 to vector<16x128xi32>
    %89 = arith.cmpi eq, %87, %88 : vector<16x128xi32>
    %cst_52 = arith.constant 0.000000e+00 : f32
    %90 = vector.broadcast %cst_52 : f32 to vector<16x128xf32>
    %91 = arith.select %89, %90, %86 : vector<16x128xi1>, vector<16x128xf32>
    %c15_i32_53 = arith.constant 15 : i32
    %92 = tpu.dynamic_rotate %85 by %c15_i32_53 dim 0 : vector<16x128xf32>, i32 -> vector<16x128xf32>
    %93 = tpu.iota {dimensions = array<i32: 0>} : vector<16x128xi32>
    %c15_i32_54 = arith.constant 15 : i32
    %94 = vector.broadcast %c15_i32_54 : i32 to vector<16x128xi32>
    %95 = arith.cmpi eq, %93, %94 : vector<16x128xi32>
    %cst_55 = arith.constant 0.000000e+00 : f32
    %96 = vector.broadcast %cst_55 : f32 to vector<16x128xf32>
    %97 = arith.select %95, %96, %92 : vector<16x128xi1>, vector<16x128xf32>
    %98 = tpu.concatenate %91, %85, %97 in 1 : vector<16x128xf32>, vector<16x128xf32>, vector<16x128xf32> -> vector<16x384xf32>
    %c2 = arith.constant 2 : index
    %c0_56 = arith.constant 0 : index
    %c0_57 = arith.constant 0 : index
    %99 = vector.load %arg5[%c2, %c0_56, %c0_57] : memref<3x384x128xbf16, #tpu.memory_space<vmem>>, vector<1x384x128xbf16>
    %100 = vector.shape_cast %99 : vector<1x384x128xbf16> to vector<384x128xbf16>
    %101 = arith.truncf %98 : vector<16x384xf32> to vector<16x384xbf16>
    %cst_58 = arith.constant dense<0.000000e+00> : vector<16x128xf32>
    %102 = tpu.matmul %101, %100, %cst_58 {dimension_numbers = #tpu.dot_dimension_numbers<[1], [0], [0], [1], [0, 0, 1, 1], [], []>} : vector<16x384xbf16>, vector<384x128xbf16>, vector<16x128xf32> -> vector<16x128xf32>
    %c2_59 = arith.constant 2 : index
    %c0_60 = arith.constant 0 : index
    %c0_61 = arith.constant 0 : index
    %103 = vector.load %arg6[%c2_59, %c0_60, %c0_61] : memref<3x1x128xf32, #tpu.memory_space<vmem>>, vector<1x1x128xf32>
    %104 = vector.shape_cast %103 : vector<1x1x128xf32> to vector<1x128xf32>
    %105 = vector.broadcast %104 : vector<1x128xf32> to vector<16x128xf32>
    %106 = arith.addf %102, %105 : vector<16x128xf32>
    %cst_62 = arith.constant 0.000000e+00 : f32
    %107 = vector.broadcast %cst_62 : f32 to vector<16x128xf32>
    %108 = arith.maximumf %106, %107 : vector<16x128xf32>
    %cst_63 = arith.constant dense<0.000000e+00> : vector<16x128xf32>
    %109 = tpu.matmul %5, %108, %cst_63 {dimension_numbers = #tpu.dot_dimension_numbers<[1], [0], [0], [1], [0, 0, 1, 1], [], []>} : vector<16x16xf32>, vector<16x128xf32>, vector<16x128xf32> -> vector<16x128xf32>
    %110 = tpu.iota {dimensions = array<i32: 1>} : vector<16x128xi32>
    %c64_i32 = arith.constant 64 : i32
    %111 = vector.broadcast %c64_i32 : i32 to vector<16x128xi32>
    %112 = arith.cmpi slt, %110, %111 : vector<16x128xi32>
    %113 = arith.select %112, %108, %109 : vector<16x128xi1>, vector<16x128xf32>
    %c1_i32_64 = arith.constant 1 : i32
    %114 = tpu.dynamic_rotate %113 by %c1_i32_64 dim 0 : vector<16x128xf32>, i32 -> vector<16x128xf32>
    %115 = tpu.iota {dimensions = array<i32: 0>} : vector<16x128xi32>
    %c0_i32_65 = arith.constant 0 : i32
    %116 = vector.broadcast %c0_i32_65 : i32 to vector<16x128xi32>
    %117 = arith.cmpi eq, %115, %116 : vector<16x128xi32>
    %cst_66 = arith.constant 0.000000e+00 : f32
    %118 = vector.broadcast %cst_66 : f32 to vector<16x128xf32>
    %119 = arith.select %117, %118, %114 : vector<16x128xi1>, vector<16x128xf32>
    %c15_i32_67 = arith.constant 15 : i32
    %120 = tpu.dynamic_rotate %113 by %c15_i32_67 dim 0 : vector<16x128xf32>, i32 -> vector<16x128xf32>
    %121 = tpu.iota {dimensions = array<i32: 0>} : vector<16x128xi32>
    %c15_i32_68 = arith.constant 15 : i32
    %122 = vector.broadcast %c15_i32_68 : i32 to vector<16x128xi32>
    %123 = arith.cmpi eq, %121, %122 : vector<16x128xi32>
    %cst_69 = arith.constant 0.000000e+00 : f32
    %124 = vector.broadcast %cst_69 : f32 to vector<16x128xf32>
    %125 = arith.select %123, %124, %120 : vector<16x128xi1>, vector<16x128xf32>
    %126 = tpu.concatenate %119, %113, %125 in 1 : vector<16x128xf32>, vector<16x128xf32>, vector<16x128xf32> -> vector<16x384xf32>
    %c0_70 = arith.constant 0 : index
    %c0_71 = arith.constant 0 : index
    %127 = vector.load %arg7[%c0_70, %c0_71] : memref<384x4xbf16, #tpu.memory_space<vmem>>, vector<384x4xbf16>
    %128 = arith.truncf %126 : vector<16x384xf32> to vector<16x384xbf16>
    %cst_72 = arith.constant dense<0.000000e+00> : vector<16x4xf32>
    %129 = tpu.matmul %128, %127, %cst_72 {dimension_numbers = #tpu.dot_dimension_numbers<[1], [0], [0], [1], [0, 0, 1, 1], [], []>} : vector<16x384xbf16>, vector<384x4xbf16>, vector<16x4xf32> -> vector<16x4xf32>
    %c0_73 = arith.constant 0 : index
    %c0_74 = arith.constant 0 : index
    %130 = vector.load %arg8[%c0_73, %c0_74] : memref<1x4xf32, #tpu.memory_space<vmem>>, vector<1x4xf32>
    %131 = vector.broadcast %130 : vector<1x4xf32> to vector<16x4xf32>
    %132 = arith.addf %129, %131 : vector<16x4xf32>
    %c0_75 = arith.constant 0 : index
    %c0_76 = arith.constant 0 : index
    %c0_77 = arith.constant 0 : index
    %133 = vector.load %arg9[%c0_75, %c0_76, %c0_77] : memref<1x16x4xf32, #tpu.memory_space<vmem>>, vector<1x16x4xf32>
    %134 = vector.shape_cast %133 : vector<1x16x4xf32> to vector<16x4xf32>
    %135 = vector.shape_cast %132 : vector<16x4xf32> to vector<1x16x4xf32>
    tpu.vector_store %arg9[%c0_75, %c0_76, %c0_77], %135 {strides = array<i32>} : memref<1x16x4xf32, #tpu.memory_space<vmem>>, vector<1x16x4xf32>,
    return
  }
  func.func @transform_0(%arg0: i32) -> (i32, i32, i32) {
    %c0_i32 = arith.constant 0 : i32
    %c0_i32_0 = arith.constant 0 : i32
    %c0_i32_1 = arith.constant 0 : i32
    return %arg0, %c0_i32, %c0_i32_0 : i32, i32, i32
  }
  func.func @transform_1(%arg0: i32) -> (i32, i32, i32) {
    %c0_i32 = arith.constant 0 : i32
    %c0_i32_0 = arith.constant 0 : i32
    %c0_i32_1 = arith.constant 0 : i32
    %c0_i32_2 = arith.constant 0 : i32
    return %c0_i32, %c0_i32_0, %c0_i32_1 : i32, i32, i32
  }
  func.func @transform_2(%arg0: i32) -> (i32, i32) {
    %c0_i32 = arith.constant 0 : i32
    %c0_i32_0 = arith.constant 0 : i32
    %c0_i32_1 = arith.constant 0 : i32
    return %c0_i32, %c0_i32_0 : i32, i32
  }
  func.func @transform_3(%arg0: i32) -> (i32, i32) {
    %c0_i32 = arith.constant 0 : i32
    %c0_i32_0 = arith.constant 0 : i32
    %c0_i32_1 = arith.constant 0 : i32
    return %c0_i32, %c0_i32_0 : i32, i32
  }
  func.func @transform_4(%arg0: i32) -> (i32, i32, i32) {
    %c0_i32 = arith.constant 0 : i32
    %c0_i32_0 = arith.constant 0 : i32
    %c0_i32_1 = arith.constant 0 : i32
    %c0_i32_2 = arith.constant 0 : i32
    return %c0_i32, %c0_i32_0, %c0_i32_1 : i32, i32, i32
  }
  func.func @transform_5(%arg0: i32) -> (i32, i32, i32) {
    %c0_i32 = arith.constant 0 : i32
    %c0_i32_0 = arith.constant 0 : i32
    %c0_i32_1 = arith.constant 0 : i32
    %c0_i32_2 = arith.constant 0 : i32
    return %c0_i32, %c0_i32_0, %c0_i32_1 : i32, i32, i32
  }
  func.func @transform_6(%arg0: i32) -> (i32, i32) {
    %c0_i32 = arith.constant 0 : i32
    %c0_i32_0 = arith.constant 0 : i32
    %c0_i32_1 = arith.constant 0 : i32
    return %c0_i32, %c0_i32_0 : i32, i32
  }
  func.func @transform_7(%arg0: i32) -> (i32, i32) {
    %c0_i32 = arith.constant 0 : i32
    %c0_i32_0 = arith.constant 0 : i32
    %c0_i32_1 = arith.constant 0 : i32
    return %c0_i32, %c0_i32_0 : i32, i32
  }
  func.func @transform_8(%arg0: i32) -> (i32, i32, i32) {
    %c0_i32 = arith.constant 0 : i32
    %c0_i32_0 = arith.constant 0 : i32
    %c0_i32_1 = arith.constant 0 : i32
    return %arg0, %c0_i32, %c0_i32_0 : i32, i32, i32
  }
}

</mosaic_0001>

<llo_original>
// kernel: tpu_custom_call.1
$region0: #{tpu_custom_call.1}
  #allocation0 [shape = 'u32[]', space=smem, size = 0x4, offset = 0x4, fixed_abs, tag = 'smem constant byte address 0x4 - core index']
  #allocation1 [shape = 'u32[144,128]{1,0:T(1,128)}', space=vmem, size = 0x12000, scoped, tag = 'internal scratch']
  %s0 = inlined_call_operand.vmem [shape: f32[2,16,4], index: 0, kind: input, shape index: {}]
  %s1 = inlined_call_operand.vmem [shape: f32[2,16,16], index: 1, kind: input, shape index: {}]
  %s2 = inlined_call_operand.vmem [shape: bf16[24,128], index: 2, kind: input, shape index: {}]
  %s3 = inlined_call_operand.vmem [shape: f32[1,128], index: 3, kind: input, shape index: {}]
  %s4 = inlined_call_operand.hbm [shape: bf16[3,384,128], index: 4, kind: input, shape index: {}]
  %s5 = inlined_call_operand.vmem [shape: f32[3,1,128], index: 5, kind: input, shape index: {}]
  %s6 = inlined_call_operand.vmem [shape: bf16[384,4], index: 6, kind: input, shape index: {}]
  %s7 = inlined_call_operand.vmem [shape: f32[1,4], index: 7, kind: input, shape index: {}]
  %s8 = inlined_call_operand.vmem [shape: f32[2,16,4], index: 8, kind: output, shape index: {}]
  %s9 = sld [smem:[#allocation0]]
  $region69: #{tpu_custom_call.1} parent=0
    _
  %s11 = ssub.s32 1, %s9
  %s12 = scalar_select 0, %s11, %s9
  $region1: #{tpu_custom_call.1} parent=0
    #allocation2 [shape = 'u8[294912]{0}', space=vmem, size = 0x48000, scoped, tag = 'input window, operand 4, single buffered']
    #allocation3 [shape = 's32[2]{0}', space=sflag, size = 0x8, scoped, tag = 'scoped memory for tpu_custom_call.1']
    %13 = vsyncpa [#allocation3], 0
    loop: start=0, step=1, limit=4
    $region2: #{tpu_custom_call.1} parent=1 // loop_pre_header
      _
    $region3: #{tpu_custom_call.1} parent=1 // loop_header
      %s15 = sphi 0, %s19
      %p16 = scmp.ge.s32.totalorder %s15, 4
      %s25 = sphi 0, %s27
      %s28 = sphi 0, %s25
      %s29 = sphi 0, %s28
      %s45 = sphi 0, %s29
      %s49 = sphi 0, %s49
      %s51 = sphi 0, %s49
      %s52 = sphi 0, %s51
      %s66 = sphi 0, %s52
      %s70 = sphi 0, %s70
      %s72 = sphi 0, %s70
      %s73 = sphi 0, %s72
      %s87 = sphi 0, %s73
      %s91 = sphi 0, %s91
      %s93 = sphi 0, %s91
      %s94 = sphi 0, %s93
      %s108 = sphi 0, %s94
      %s112 = sphi 0, %s112
      %s114 = sphi 0, %s112
      %s115 = sphi 0, %s114
      %s129 = sphi 0, %s115
      %s133 = sphi 0, %s133
      %s135 = sphi 0, %s133
      %s136 = sphi 0, %s135
      %s150 = sphi 0, %s136
      %s154 = sphi 0, %s154
      %s156 = sphi 0, %s154
      %s157 = sphi 0, %s156
      %s171 = sphi 0, %s157
      %s175 = sphi 0, %s175
      %s177 = sphi 0, %s175
      %s178 = sphi 0, %s177
      %s192 = sphi 0, %s178
      %s198 = sphi 0, %s200
      %s201 = sphi 0, %s198
      %s202 = sphi 0, %s201
      %s218 = sphi 0, %s202
    $region4: #{tpu_custom_call.1} parent=1 // loop_header_branch
      %18 = sbr.rel (%p16) target = $region8
    $region5: #{tpu_custom_call.1} parent=1 // loop_body
      %s20 = ssub.s32 %s15, 1
      %s21 = ssub.s32 %s15, 2
      %s22 = sadd.s32 %s15, 1
      %s23 = ssub.s32 %s15, %s22
      %p24 = scmp.eq.s32.totalorder %s23, 0
      %s26 = sadd.s32 %s25, 1
      %s27 = scalar_select %p24, %s25, %s26
      %p30 = pneg %p24
      %p31 = scmp.eq.s32.totalorder %s15, 1
      %p32 = por %p30, %p31
      %p33 = scmp.ne.s32.totalorder %s25, %s28
      %p34 = scmp.eq.s32.totalorder %s15, 0
      %p35 = por %p33, %p34
      %p36 = scmp.ne.s32.totalorder %s25, %s28
      %p37 = scmp.eq.s32.totalorder %s20, 1
      %p38 = por %p36, %p37
      %p39 = scmp.ne.s32.totalorder %s28, %s29
      %p40 = scmp.eq.s32.totalorder %s20, 0
      %p41 = por %p39, %p40
      %p42 = scmp.ne.s32.totalorder %s28, %s29
      %p43 = scmp.eq.s32.totalorder %s21, 1
      %p44 = por %p42, %p43
      %p46 = scmp.ne.s32.totalorder %s29, %s45
      %p47 = scmp.eq.s32.totalorder %s21, 0
      %p48 = por %p46, %p47
      %s50 = sadd.s32 %s49, 1
      %p53 = scmp.eq.s32.totalorder %s15, 1
      %p54 = scmp.ne.s32.totalorder %s49, %s51
      %p55 = scmp.eq.s32.totalorder %s15, 0
      %p56 = por %p54, %p55
      %p57 = scmp.ne.s32.totalorder %s49, %s51
      %p58 = scmp.eq.s32.totalorder %s20, 1
      %p59 = por %p57, %p58
      %p60 = scmp.ne.s32.totalorder %s51, %s52
      %p61 = scmp.eq.s32.totalorder %s20, 0
      %p62 = por %p60, %p61
      %p63 = scmp.ne.s32.totalorder %s51, %s52
      %p64 = scmp.eq.s32.totalorder %s21, 1
      %p65 = por %p63, %p64
      %p67 = scmp.ne.s32.totalorder %s52, %s66
      %p68 = scmp.eq.s32.totalorder %s21, 0
      %p69 = por %p67, %p68
      %s71 = sadd.s32 %s70, 1
      %p74 = scmp.eq.s32.totalorder %s15, 1
      %p75 = scmp.ne.s32.totalorder %s70, %s72
      %p76 = scmp.eq.s32.totalorder %s15, 0
      %p77 = por %p75, %p76
      %p78 = scmp.ne.s32.totalorder %s70, %s72
      %p79 = scmp.eq.s32.totalorder %s20, 1
      %p80 = por %p78, %p79
      %p81 = scmp.ne.s32.totalorder %s72, %s73
      %p82 = scmp.eq.s32.totalorder %s20, 0
      %p83 = por %p81, %p82
      %p84 = scmp.ne.s32.totalorder %s72, %s73
      %p85 = scmp.eq.s32.totalorder %s21, 1
      %p86 = por %p84, %p85
      %p88 = scmp.ne.s32.totalorder %s73, %s87
      %p89 = scmp.eq.s32.totalorder %s21, 0
      %p90 = por %p88, %p89
      %s92 = sadd.s32 %s91, 1
      %p95 = scmp.eq.s32.totalorder %s15, 1
      %p96 = scmp.ne.s32.totalorder %s91, %s93
      %p97 = scmp.eq.s32.totalorder %s15, 0
      %p98 = por %p96, %p97
      %p99 = scmp.ne.s32.totalorder %s91, %s93
      %p100 = scmp.eq.s32.totalorder %s20, 1
      %p101 = por %p99, %p100
      %p102 = scmp.ne.s32.totalorder %s93, %s94
      %p103 = scmp.eq.s32.totalorder %s20, 0
      %p104 = por %p102, %p103
      %p105 = scmp.ne.s32.totalorder %s93, %s94
      %p106 = scmp.eq.s32.totalorder %s21, 1
      %p107 = por %p105, %p106
      %p109 = scmp.ne.s32.totalorder %s94, %s108
      %p110 = scmp.eq.s32.totalorder %s21, 0
      %p111 = por %p109, %p110
      %s113 = sadd.s32 %s112, 1
      %p116 = scmp.eq.s32.totalorder %s15, 1
      %p117 = scmp.ne.s32.totalorder %s112, %s114
      %p118 = scmp.eq.s32.totalorder %s15, 0
      %p119 = por %p117, %p118
      %p120 = scmp.ne.s32.totalorder %s112, %s114
      %p121 = scmp.eq.s32.totalorder %s20, 1
      %p122 = por %p120, %p121
      %p123 = scmp.ne.s32.totalorder %s114, %s115
      %p124 = scmp.eq.s32.totalorder %s20, 0
      %p125 = por %p123, %p124
      %p126 = scmp.ne.s32.totalorder %s114, %s115
      %p127 = scmp.eq.s32.totalorder %s21, 1
      %p128 = por %p126, %p127
      %p130 = scmp.ne.s32.totalorder %s115, %s129
      %p131 = scmp.eq.s32.totalorder %s21, 0
      %p132 = por %p130, %p131
      %s134 = sadd.s32 %s133, 1
      %p137 = scmp.eq.s32.totalorder %s15, 1
      %p138 = scmp.ne.s32.totalorder %s133, %s135
      %p139 = scmp.eq.s32.totalorder %s15, 0
      %p140 = por %p138, %p139
      %p141 = scmp.ne.s32.totalorder %s133, %s135
      %p142 = scmp.eq.s32.totalorder %s20, 1
      %p143 = por %p141, %p142
      %p144 = scmp.ne.s32.totalorder %s135, %s136
      %p145 = scmp.eq.s32.totalorder %s20, 0
      %p146 = por %p144, %p145
      %p147 = scmp.ne.s32.totalorder %s135, %s136
      %p148 = scmp.eq.s32.totalorder %s21, 1
      %p149 = por %p147, %p148
      %p151 = scmp.ne.s32.totalorder %s136, %s150
      %p152 = scmp.eq.s32.totalorder %s21, 0
      %p153 = por %p151, %p152
      %s155 = sadd.s32 %s154, 1
      %p158 = scmp.eq.s32.totalorder %s15, 1
      %p159 = scmp.ne.s32.totalorder %s154, %s156
      %p160 = scmp.eq.s32.totalorder %s15, 0
      %p161 = por %p159, %p160
      %p162 = scmp.ne.s32.totalorder %s154, %s156
      %p163 = scmp.eq.s32.totalorder %s20, 1
      %p164 = por %p162, %p163
      %p165 = scmp.ne.s32.totalorder %s156, %s157
      %p166 = scmp.eq.s32.totalorder %s20, 0
      %p167 = por %p165, %p166
      %p168 = scmp.ne.s32.totalorder %s156, %s157
      %p169 = scmp.eq.s32.totalorder %s21, 1
      %p170 = por %p168, %p169
      %p172 = scmp.ne.s32.totalorder %s157, %s171
      %p173 = scmp.eq.s32.totalorder %s21, 0
      %p174 = por %p172, %p173
      %s176 = sadd.s32 %s175, 1
      %p179 = scmp.eq.s32.totalorder %s15, 1
      %p180 = scmp.ne.s32.totalorder %s175, %s177
      %p181 = scmp.eq.s32.totalorder %s15, 0
      %p182 = por %p180, %p181
      %p183 = scmp.ne.s32.totalorder %s175, %s177
      %p184 = scmp.eq.s32.totalorder %s20, 1
      %p185 = por %p183, %p184
      %p186 = scmp.ne.s32.totalorder %s177, %s178
      %p187 = scmp.eq.s32.totalorder %s20, 0
      %p188 = por %p186, %p187
      %p189 = scmp.ne.s32.totalorder %s177, %s178
      %p190 = scmp.eq.s32.totalorder %s21, 1
      %p191 = por %p189, %p190
      %p193 = scmp.ne.s32.totalorder %s178, %s192
      %p194 = scmp.eq.s32.totalorder %s21, 0
      %p195 = por %p193, %p194
      %s196 = ssub.s32 %s15, %s22
      %p197 = scmp.eq.s32.totalorder %s196, 0
      %s199 = sadd.s32 %s198, 1
      %s200 = scalar_select %p197, %s198, %s199
      %p203 = pneg %p197
      %p204 = scmp.eq.s32.totalorder %s15, 1
      %p205 = por %p203, %p204
      %p206 = scmp.ne.s32.totalorder %s198, %s201
      %p207 = scmp.eq.s32.totalorder %s15, 0
      %p208 = por %p206, %p207
      %p209 = scmp.ne.s32.totalorder %s198, %s201
      %p210 = scmp.eq.s32.totalorder %s20, 1
      %p211 = por %p209, %p210
      %p212 = scmp.ne.s32.totalorder %s201, %s202
      %p213 = scmp.eq.s32.totalorder %s20, 0
      %p214 = por %p212, %p213
      %p215 = scmp.ne.s32.totalorder %s201, %s202
      %p216 = scmp.eq.s32.totalorder %s21, 1
      %p217 = por %p215, %p216
      %p219 = scmp.ne.s32.totalorder %s202, %s218
      %p220 = scmp.eq.s32.totalorder %s21, 0
      %p221 = por %p219, %p220
      %p222 = scmp.le.s32.totalorder 1, %s15
      %p223 = scmp.lt.s32.totalorder %s15, 3
      %p224 = pnand %p222, %p223
      %p225 = pneg %p224
      // Predicated region
      $region9: #{tpu_custom_call.1} parent=5 // pred_check
        _
      $region10: #{tpu_custom_call.1} parent=5 // pred_check_branch
        %227 = sbr.rel (%p224) target = $region12
      $region11: #{tpu_custom_call.1} parent=5 // pred_region
        %s228 = ssub.s32 %s15, 1
        // Predicated region
        $region13: #{tpu_custom_call.1} parent=11 // pred_check
          %p229 = pneg %p62
        $region14: #{tpu_custom_call.1} parent=11 // pred_check_branch
          %231 = sbr.rel (%p229) target = $region16
        $region15: #{tpu_custom_call.1} parent=11 // pred_region
          _
        $region16: #{tpu_custom_call.1} parent=11 // pred_fallthru
          _
        // Predicated region
        $region17: #{tpu_custom_call.1} parent=11 // pred_check
          %p232 = pneg %p83
        $region18: #{tpu_custom_call.1} parent=11 // pred_check_branch
          %234 = sbr.rel (%p232) target = $region20
        $region19: #{tpu_custom_call.1} parent=11 // pred_region
          _
        $region20: #{tpu_custom_call.1} parent=11 // pred_fallthru
          _
        // Predicated region
        $region21: #{tpu_custom_call.1} parent=11 // pred_check
          %p235 = pneg %p104
        $region22: #{tpu_custom_call.1} parent=11 // pred_check_branch
          %237 = sbr.rel (%p235) target = $region24
        $region23: #{tpu_custom_call.1} parent=11 // pred_region
          _
        $region24: #{tpu_custom_call.1} parent=11 // pred_fallthru
          _
        // Predicated region
        $region25: #{tpu_custom_call.1} parent=11 // pred_check
          %p238 = pneg %p125
        $region26: #{tpu_custom_call.1} parent=11 // pred_check_branch
          %240 = sbr.rel (%p238) target = $region28
        $region27: #{tpu_custom_call.1} parent=11 // pred_region
          %s242 = ssub.s32 9216, 9216
          %243 = vsyncadd [#allocation3], %s242
          %s244 = sshll.u32 [#allocation2], 4
          %s245 = int_to_ptr.vmem [resolvable:$true] %s244
          %250 = dma.hbm_to_vmem [thread:$0]  %s4, 9216, %s245, [#allocation3], 64, 64, 4
        $region28: #{tpu_custom_call.1} parent=11 // pred_fallthru
          _
        // Predicated region
        $region29: #{tpu_custom_call.1} parent=11 // pred_check
          %p251 = pneg %p146
        $region30: #{tpu_custom_call.1} parent=11 // pred_check_branch
          %253 = sbr.rel (%p251) target = $region32
        $region31: #{tpu_custom_call.1} parent=11 // pred_region
          _
        $region32: #{tpu_custom_call.1} parent=11 // pred_fallthru
          _
        // Predicated region
        $region33: #{tpu_custom_call.1} parent=11 // pred_check
          %p254 = pneg %p167
        $region34: #{tpu_custom_call.1} parent=11 // pred_check_branch
          %256 = sbr.rel (%p254) target = $region36
        $region35: #{tpu_custom_call.1} parent=11 // pred_region
          _
        $region36: #{tpu_custom_call.1} parent=11 // pred_fallthru
          _
        // Predicated region
        $region37: #{tpu_custom_call.1} parent=11 // pred_check
          %p257 = pneg %p188
        $region38: #{tpu_custom_call.1} parent=11 // pred_check_branch
          %259 = sbr.rel (%p257) target = $region40
        $region39: #{tpu_custom_call.1} parent=11 // pred_region
          _
        $region40: #{tpu_custom_call.1} parent=11 // pred_fallthru
          _
      $region12: #{tpu_custom_call.1} parent=5 // pred_fallthru
        _
      %p260 = scmp.lt.s32.totalorder %s15, 2
      // Predicated region
      $region41: #{tpu_custom_call.1} parent=5 // pred_check
        %p261 = pneg %p260
      $region42: #{tpu_custom_call.1} parent=5 // pred_check_branch
        %263 = sbr.rel (%p261) target = $region44
      $region43: #{tpu_custom_call.1} parent=5 // pred_region
        // Predicated region
        $region45: #{tpu_custom_call.1} parent=43 // pred_check
          %p264 = pneg %p35
        $region46: #{tpu_custom_call.1} parent=43 // pred_check_branch
          %266 = sbr.rel (%p264) target = $region48
        $region47: #{tpu_custom_call.1} parent=43 // pred_region
          %p267 = scmp.lt.s32.totalorder %s15, 1
          %s268 = scalar_select %p267, %s15, 1
          %s269 = smul.addr %s268, 2
          %s270 = smul.addr %s269, 8
          %s271 = scalar_lea.vmem %s0, %s270
        $region48: #{tpu_custom_call.1} parent=43 // pred_fallthru
          _
      $region44: #{tpu_custom_call.1} parent=5 // pred_fallthru
        _
      %p272 = scmp.le.s32.totalorder 1, %s15
      %p273 = scmp.lt.s32.totalorder %s15, 3
      %p274 = pnand %p272, %p273
      %p275 = pneg %p274
      // Predicated region
      $region49: #{tpu_custom_call.1} parent=5 // pred_check
        _
      $region50: #{tpu_custom_call.1} parent=5 // pred_check_branch
        %277 = sbr.rel (%p274) target = $region52
      $region51: #{tpu_custom_call.1} parent=5 // pred_region
        %s278 = ssub.s32 %s15, 1
        // Predicated region
        $region53: #{tpu_custom_call.1} parent=51 // pred_check
          %p279 = pneg %p125
        $region54: #{tpu_custom_call.1} parent=51 // pred_check_branch
          %281 = sbr.rel (%p279) target = $region56
        $region55: #{tpu_custom_call.1} parent=51 // pred_region
          %282 = dma.done [#allocation3], 9216
        $region56: #{tpu_custom_call.1} parent=51 // pred_fallthru
          _
        %p283 = scmp.lt.s32.totalorder %s20, 1
        %s284 = scalar_select %p283, %s20, 1
        %s285 = smul.addr %s284, 2
        %s286 = smul.addr %s285, 8
        %s287 = scalar_lea.vmem %s0, %s286
        %p288 = pneg %p41
        %p289 = pneg %p38
        %p290 = pneg %p62
        %p291 = pneg %p59
        %p292 = pneg %p83
        %p293 = pneg %p80
        %p294 = pneg %p104
        %p295 = pneg %p101
        %p296 = pneg %p125
        %p297 = pneg %p122
        %p298 = pneg %p146
        %p299 = pneg %p143
        %p300 = pneg %p167
        %p301 = pneg %p164
        %p302 = pneg %p188
        %p303 = pneg %p185
        %p304 = pneg %p214
        %p305 = pneg %p211
        %p306 = scmp.lt.s32.totalorder %s20, 1
        %s307 = scalar_select %p306, %s20, 1
        %s308 = smul.addr %s307, 2
        %s309 = smul.addr %s308, 8
        %s310 = scalar_lea.vmem %s8, %s309
        %p311 = scmp.lt.s32.totalorder %s20, 1
        %s312 = scalar_select %p311, %s20, 1
        %s313 = smul.addr %s312, 2
        %s314 = smul.addr %s313, 8
        %s315 = scalar_lea.vmem %s0, %s314
        %p316 = scmp.lt.s32.totalorder %s20, 1
        %s317 = scalar_select %p316, %s20, 1
        %s318 = smul.addr %s317, 2
        %s319 = smul.addr %s318, 8
        %s320 = scalar_lea.vmem %s8, %s319
        %v322 = vld [vmem:[%s315] sm:$0xff]
        %v323 = vld [vmem:[%s315 + $0x8] sm:$0xff]
        %v324 = vld [vmem:[%s1] sm:$0xff]
        %v325 = vld [vmem:[%s1 + $0x8] sm:$0xff]
        %s326 = scalar_lea.vmem %s1, 16
        %v327 = vld [vmem:[%s326] sm:$0xff]
        %v328 = vld [vmem:[%s326 + $0x8] sm:$0xff]
        %vm329 = vcmask 130048
        %v331 = vsel %vm329, %v324, 0
        %v334 = vsel %vm329, %v325, 0
        %336 = vmatprep.subr.mxu0 0.0
        %337 = vmatpush1.msra.mxu0 %v322
        %338 = vmatprep.subr.mxu0 0.0
        %339 = vmatpush1.msra.mxu0 %v323
        %340 = vmatprep.subr.mxu0 0.0
        %341 = vmatpush1.msra.mxu0 0.0
        %342 = vmatprep.subr.mxu0 0.0
        %343 = vmatpush1.msra.mxu0 0.0
        %344 = vmatprep.subr.mxu0 0.0
        %345 = vmatpush1.msra.mxu0 0.0
        %346 = vmatprep.subr.mxu0 0.0
        %347 = vmatpush1.msra.mxu0 0.0
        %348 = vmatprep.subr.mxu0 0.0
        %349 = vmatpush1.msra.mxu0 0.0
        %350 = vmatprep.subr.mxu0 0.0
        %351 = vmatpush1.msra.mxu0 0.0
        %352 = vmatprep.subr.mxu0 0.0
        %353 = vmatpush1.msra.mxu0 0.0
        %354 = vmatprep.subr.mxu0 0.0
        %355 = vmatpush1.msra.mxu0 0.0
        %356 = vmatprep.subr.mxu0 0.0
        %357 = vmatpush1.msra.mxu0 0.0
        %358 = vmatprep.subr.mxu0 0.0
        %359 = vmatpush1.msra.mxu0 0.0
        %360 = vmatprep.subr.mxu0 0.0
        %361 = vmatpush1.msra.mxu0 0.0
        %362 = vmatprep.subr.mxu0 0.0
        %363 = vmatpush1.msra.mxu0 0.0
        %364 = vmatprep.subr.mxu0 0.0
        %365 = vmatpush1.msra.mxu0 0.0
        %366 = vmatprep.subr.mxu0 0.0
        %367 = vmatpush1.msra.mxu0 0.0
        %368 = vmatprep.subr.mxu0 0.0
        %369 = vmatpush1.msra.mxu0 0.0
        %370 = vmatprep.subr.mxu0 0.0
        %371 = vmatpush1.msra.mxu0 0.0
        %372 = vmatprep.subr.mxu0 0.0
        %373 = vmatpush1.msra.mxu0 0.0
        %374 = vmatprep.subr.mxu0 0.0
        %375 = vmatpush1.msra.mxu0 0.0
        %376 = vmatprep.subr.mxu0 0.0
        %377 = vmatpush1.msra.mxu0 0.0
        %378 = vmatprep.subr.mxu0 0.0
        %379 = vmatpush1.msra.mxu0 0.0
        %380 = vmatprep.subr.mxu0 0.0
        %381 = vmatpush1.msra.mxu0 0.0
        %382 = vmatprep.subr.mxu0 0.0
        %383 = vmatpush1.msra.mxu0 0.0
        %384 = vmatprep.subr.mxu0 0.0
        %385 = vmatpush1.msra.mxu0 0.0
        %386 = vmatprep.subr.mxu0 0.0
        %387 = vmatpush1.msra.mxu0 0.0
        %388 = vmatprep.subr.mxu0 0.0
        %389 = vmatpush1.msra.mxu0 0.0
        %390 = vmatprep.subr.mxu0 0.0
        %391 = vmatpush1.msra.mxu0 0.0
        %392 = vmatprep.subr.mxu0 0.0
        %393 = vmatpush1.msra.mxu0 0.0
        %394 = vmatprep.subr.mxu0 0.0
        %395 = vmatpush1.msra.mxu0 0.0
        %396 = vmatprep.subr.mxu0 0.0
        %397 = vmatpush1.msra.mxu0 0.0
        %398 = vmatprep.subr.mxu0 0.0
        %399 = vmatpush1.msra.mxu0 0.0
        %400 = vmatprep.mubr.f32.mxu0 0.0
        %401 = vmatmul.mubr.f32.gmra.mrb[0].mxu0 %v331
        %v402 = vpop.f32.mrb[0].mxu0
        %v403 = vadd.f32 0.0, %v402
        %v404 = vpop.f32.mrb[0].mxu0
        %405 = vmatprep.mubr.f32.mxu0 0.0
        %406 = vmatmul.mubr.f32.gmra.mrb[0].mxu0 %v334
        %v407 = vpop.f32.mrb[0].mxu0
        %v408 = vadd.f32 0.0, %v407
        %v409 = vpop.f32.mrb[0].mxu0
        %410 = vdwg.mxu0
        %v411 = vrot.slane %v322, 7
        %v412 = vrot.slane %v323, 7
        %v413 = vlaneseq
        %v414 = vshrl.u32 %v413, 7
        %vm415 = vcmp.lt.s32.totalorder %v414, 1
        %v416 = vsel %vm415, %v411, %v412
        %v417 = vsel %vm415, %v412, %v411
        %v418 = vadd.s32 %v414, 8
        %vm419 = vcmp.eq.s32.totalorder %v414, 0
        %vm420 = vcmp.eq.s32.totalorder %v418, 0
        %v421 = vsel %vm419, 0.0, %v417
        %v422 = vsel %vm420, 0.0, %v416
        %v423 = vrot.slane %v322, 1
        %v424 = vrot.slane %v323, 1
        %vm425 = vcmp.lt.s32.totalorder %v414, 7
        %v426 = vsel %vm425, %v423, %v424
        %v427 = vsel %vm425, %v424, %v423
        %vm428 = vcmp.eq.s32.totalorder %v414, 15
        %vm429 = vcmp.eq.s32.totalorder %v418, 15
        %v430 = vsel %vm428, 0.0, %v426
        %v431 = vsel %vm429, 0.0, %v427
        %v432 = vrot.slane %v403, 7
        %v433 = vrot.slane %v408, 7
        %v434 = vsel %vm415, %v432, %v433
        %v435 = vsel %vm415, %v433, %v432
        %v436 = vsel %vm419, 0.0, %v435
        %v437 = vsel %vm420, 0.0, %v434
        %v438 = vrot.slane %v403, 1
        %v439 = vrot.slane %v408, 1
        %v440 = vsel %vm425, %v438, %v439
        %v441 = vsel %vm425, %v439, %v438
        %v442 = vsel %vm428, 0.0, %v440
        %v443 = vsel %vm429, 0.0, %v441
        %446 = vrot.lane.b32.xlu0 %v322, 4
        %v447 = vpop.permute.xlu0 %446
        %448 = vrot.lane.b32.xlu0 %v323, 4
        %v449 = vpop.permute.xlu0 %448
        %454 = vrot.lane.b32.xlu0 %v430, 8
        %v455 = vpop.permute.xlu0 %454
        %456 = vrot.lane.b32.xlu0 %v431, 8
        %v457 = vpop.permute.xlu0 %456
        %462 = vrot.lane.b32.xlu0 %v436, 12
        %v463 = vpop.permute.xlu0 %462
        %464 = vrot.lane.b32.xlu0 %v437, 12
        %v465 = vpop.permute.xlu0 %464
        %470 = vrot.lane.b32.xlu0 %v403, 16
        %v471 = vpop.permute.xlu0 %470
        %472 = vrot.lane.b32.xlu0 %v408, 16
        %v473 = vpop.permute.xlu0 %472
        %478 = vrot.lane.b32.xlu0 %v442, 20
        %v479 = vpop.permute.xlu0 %478
        %480 = vrot.lane.b32.xlu0 %v443, 20
        %v481 = vpop.permute.xlu0 %480
        %vm484 = vcmask 31744
        %v485 = vsel %vm484, %v421, %v447
        %v486 = vsel %vm484, %v422, %v449
        %vm487 = vcmask 64512
        %v488 = vsel %vm487, %v485, %v455
        %v489 = vsel %vm487, %v486, %v457
        %vm490 = vcmask 97280
        %v491 = vsel %vm490, %v488, %v463
        %v492 = vsel %vm490, %v489, %v465
        %v493 = vsel %vm329, %v491, %v471
        %v494 = vsel %vm329, %v492, %v473
        %vm495 = vcmask 162816
        %v496 = vsel %vm495, %v493, %v479
        %v497 = vsel %vm495, %v494, %v481
        %v498 = vld [vmem:[%s2] sm:$0xf]
        %v499 = vld [vmem:[%s2 + $0x4] sm:$0xf]
        %v500 = vld [vmem:[%s2 + $0x8] sm:$0xf]
        %v501 = vpack.c.bf16 %v497, %v496
        %v502 = vld [vmem:[%s3] sm:$0x1]
        %v504 = vlaneseq
        %v505 = vshrl.u32 %v504, 7
        %v506 = vsub.s32 0, %v505
        %v507 = vrot.slane %v502, %v506
        %v512 = vunpack.c.l.b16 %v498
        %v513 = vunpack.c.l.b16 %v499
        %v514 = vunpack.c.l.b16 %v500
        %v515 = vpack.c.b16 %v513, %v512
        %v516 = vpack.c.b16 %v514, %v514
        %vm518 = vcmask 195584
        %v520 = vsel %vm518, %v501, 0
        %vm522 = vcmask 1043456
        %v524 = vsel %vm522, %v516, 0
        %526 = vmatprep.subr.bf16.mxu0 0
        %527 = vmatpush1.bf16.msra.mxu0 %v515
        %528 = vmatprep.subr.bf16.mxu0 0
        %529 = vmatpush1.bf16.msra.mxu0 %v524
        %530 = vmatprep.subr.bf16.mxu0 0
        %531 = vmatpush1.bf16.msra.mxu0 0
        %532 = vmatprep.subr.bf16.mxu0 0
        %533 = vmatpush1.bf16.msra.mxu0 0
        %534 = vmatprep.subr.bf16.mxu0 0
        %535 = vmatpush1.bf16.msra.mxu0 0
        %536 = vmatprep.subr.bf16.mxu0 0
        %537 = vmatpush1.bf16.msra.mxu0 0
        %538 = vmatprep.subr.bf16.mxu0 0
        %539 = vmatpush1.bf16.msra.mxu0 0
        %540 = vmatprep.subr.bf16.mxu0 0
        %541 = vmatpush1.bf16.msra.mxu0 0
        %542 = vmatprep.subr.bf16.mxu0 0
        %543 = vmatpush1.bf16.msra.mxu0 0
        %544 = vmatprep.subr.bf16.mxu0 0
        %545 = vmatpush1.bf16.msra.mxu0 0
        %546 = vmatprep.subr.bf16.mxu0 0
        %547 = vmatpush1.bf16.msra.mxu0 0
        %548 = vmatprep.subr.bf16.mxu0 0
        %549 = vmatpush1.bf16.msra.mxu0 0
        %550 = vmatprep.subr.bf16.mxu0 0
        %551 = vmatpush1.bf16.msra.mxu0 0
        %552 = vmatprep.subr.bf16.mxu0 0
        %553 = vmatpush1.bf16.msra.mxu0 0
        %554 = vmatprep.subr.bf16.mxu0 0
        %555 = vmatpush1.bf16.msra.mxu0 0
        %556 = vmatprep.subr.bf16.mxu0 0
        %557 = vmatpush1.bf16.msra.mxu0 0
        %558 = vmatprep.mubr.bf16.mxu0 0
        %559 = vmatmul.mubr.bf16.gmra.mrb[0].mxu0 %v520
        %v560 = vpop.f32.mrb[0].mxu0
        %v561 = vadd.f32 %v507, %v560
        %v562 = vpop.f32.mrb[0].mxu0
        %v563 = vpop.f32.mrb[0].mxu0
        %v564 = vadd.f32 %v507, %v563
        %v565 = vpop.f32.mrb[0].mxu0
        %566 = vdwg.mxu0
        %v567 = vmax.f32 %v561, 0.0
        %v568 = vmax.f32 %v564, 0.0
        %v569 = vrot.slane %v567, 7
        %v570 = vrot.slane %v568, 7
        %v571 = vsel %vm415, %v569, %v570
        %v572 = vsel %vm415, %v570, %v569
        %v573 = vsel %vm419, 0.0, %v572
        %v574 = vsel %vm420, 0.0, %v571
        %v575 = vrot.slane %v567, 1
        %v576 = vrot.slane %v568, 1
        %v577 = vsel %vm425, %v575, %v576
        %v578 = vsel %vm425, %v576, %v575
        %v579 = vsel %vm428, 0.0, %v577
        %v580 = vsel %vm429, 0.0, %v578
        %v581 = vld [vmem:[#allocation2] sm:$0xf]
        %v582 = vld [vmem:[#allocation2 + $0x4] sm:$0xf]
        %v583 = vld [vmem:[#allocation2 + $0x8] sm:$0xf]
        %v584 = vld [vmem:[#allocation2 + $0xc] sm:$0xf]
        %v585 = vld [vmem:[#allocation2 + $0x10] sm:$0xf]
        %v586 = vld [vmem:[#allocation2 + $0x14] sm:$0xf]
        %v587 = vld [vmem:[#allocation2 + $0x18] sm:$0xf]
        %v588 = vld [vmem:[#allocation2 + $0x1c] sm:$0xf]
        %v589 = vld [vmem:[#allocation2 + $0x20] sm:$0xf]
        %v590 = vld [vmem:[#allocation2 + $0x24] sm:$0xf]
        %v591 = vld [vmem:[#allocation2 + $0x28] sm:$0xf]
        %v592 = vld [vmem:[#allocation2 + $0x2c] sm:$0xf]
        %v593 = vld [vmem:[#allocation2 + $0x30] sm:$0xf]
        %v594 = vld [vmem:[#allocation2 + $0x34] sm:$0xf]
        %v595 = vld [vmem:[#allocation2 + $0x38] sm:$0xf]
        %v596 = vld [vmem:[#allocation2 + $0x3c] sm:$0xf]
        %v597 = vld [vmem:[#allocation2 + $0x40] sm:$0xf]
        %v598 = vld [vmem:[#allocation2 + $0x44] sm:$0xf]
        %v599 = vld [vmem:[#allocation2 + $0x48] sm:$0xf]
        %v600 = vld [vmem:[#allocation2 + $0x4c] sm:$0xf]
        %v601 = vld [vmem:[#allocation2 + $0x50] sm:$0xf]
        %v602 = vld [vmem:[#allocation2 + $0x54] sm:$0xf]
        %v603 = vld [vmem:[#allocation2 + $0x58] sm:$0xf]
        %v604 = vld [vmem:[#allocation2 + $0x5c] sm:$0xf]
        %v605 = vld [vmem:[#allocation2 + $0x60] sm:$0xf]
        %v606 = vld [vmem:[#allocation2 + $0x64] sm:$0xf]
        %v607 = vld [vmem:[#allocation2 + $0x68] sm:$0xf]
        %v608 = vld [vmem:[#allocation2 + $0x6c] sm:$0xf]
        %v609 = vld [vmem:[#allocation2 + $0x70] sm:$0xf]
        %v610 = vld [vmem:[#allocation2 + $0x74] sm:$0xf]
        %v611 = vld [vmem:[#allocation2 + $0x78] sm:$0xf]
        %v612 = vld [vmem:[#allocation2 + $0x7c] sm:$0xf]
        %v613 = vld [vmem:[#allocation2 + $0x80] sm:$0xf]
        %v614 = vld [vmem:[#allocation2 + $0x84] sm:$0xf]
        %v615 = vld [vmem:[#allocation2 + $0x88] sm:$0xf]
        %v616 = vld [vmem:[#allocation2 + $0x8c] sm:$0xf]
        %v617 = vld [vmem:[#allocation2 + $0x90] sm:$0xf]
        %v618 = vld [vmem:[#allocation2 + $0x94] sm:$0xf]
        %v619 = vld [vmem:[#allocation2 + $0x98] sm:$0xf]
        %v620 = vld [vmem:[#allocation2 + $0x9c] sm:$0xf]
        %v621 = vld [vmem:[#allocation2 + $0xa0] sm:$0xf]
        %v622 = vld [vmem:[#allocation2 + $0xa4] sm:$0xf]
        %v623 = vld [vmem:[#allocation2 + $0xa8] sm:$0xf]
        %v624 = vld [vmem:[#allocation2 + $0xac] sm:$0xf]
        %v625 = vld [vmem:[#allocation2 + $0xb0] sm:$0xf]
        %v626 = vld [vmem:[#allocation2 + $0xb4] sm:$0xf]
        %v627 = vld [vmem:[#allocation2 + $0xb8] sm:$0xf]
        %v628 = vld [vmem:[#allocation2 + $0xbc] sm:$0xf]
        %v629 = vpack.c.bf16 %v574, %v573
        %v630 = vpack.c.bf16 %v568, %v567
        %v631 = vpack.c.bf16 %v580, %v579
        %v632 = vld [vmem:[%s5] sm:$0x1]
        %v634 = vlaneseq
        %v635 = vshrl.u32 %v634, 7
        %v636 = vsub.s32 0, %v635
        %v637 = vrot.slane %v632, %v636
        %v687 = vunpack.c.l.b16 %v581
        %v688 = vunpack.c.l.b16 %v582
        %v689 = vunpack.c.l.b16 %v583
        %v690 = vunpack.c.l.b16 %v584
        %v691 = vunpack.c.l.b16 %v585
        %v692 = vunpack.c.l.b16 %v586
        %v693 = vunpack.c.l.b16 %v587
        %v694 = vunpack.c.l.b16 %v588
        %v695 = vunpack.c.l.b16 %v589
        %v696 = vunpack.c.l.b16 %v590
        %v697 = vunpack.c.l.b16 %v591
        %v698 = vunpack.c.l.b16 %v592
        %v699 = vunpack.c.l.b16 %v593
        %v700 = vunpack.c.l.b16 %v594
        %v701 = vunpack.c.l.b16 %v595
        %v702 = vunpack.c.l.b16 %v596
        %v703 = vunpack.c.l.b16 %v597
        %v704 = vunpack.c.l.b16 %v598
        %v705 = vunpack.c.l.b16 %v599
        %v706 = vunpack.c.l.b16 %v600
        %v707 = vunpack.c.l.b16 %v601
        %v708 = vunpack.c.l.b16 %v602
        %v709 = vunpack.c.l.b16 %v603
        %v710 = vunpack.c.l.b16 %v604
        %v711 = vunpack.c.l.b16 %v605
        %v712 = vunpack.c.l.b16 %v606
        %v713 = vunpack.c.l.b16 %v607
        %v714 = vunpack.c.l.b16 %v608
        %v715 = vunpack.c.l.b16 %v609
        %v716 = vunpack.c.l.b16 %v610
        %v717 = vunpack.c.l.b16 %v611
        %v718 = vunpack.c.l.b16 %v612
        %v719 = vunpack.c.l.b16 %v613
        %v720 = vunpack.c.l.b16 %v614
        %v721 = vunpack.c.l.b16 %v615
        %v722 = vunpack.c.l.b16 %v616
        %v723 = vunpack.c.l.b16 %v617
        %v724 = vunpack.c.l.b16 %v618
        %v725 = vunpack.c.l.b16 %v619
        %v726 = vunpack.c.l.b16 %v620
        %v727 = vunpack.c.l.b16 %v621
        %v728 = vunpack.c.l.b16 %v622
        %v729 = vunpack.c.l.b16 %v623
        %v730 = vunpack.c.l.b16 %v624
        %v731 = vunpack.c.l.b16 %v625
        %v732 = vunpack.c.l.b16 %v626
        %v733 = vunpack.c.l.b16 %v627
        %v734 = vunpack.c.l.b16 %v628
        %v735 = vpack.c.b16 %v688, %v687
        %v736 = vpack.c.b16 %v690, %v689
        %v737 = vpack.c.b16 %v692, %v691
        %v738 = vpack.c.b16 %v694, %v693
        %v739 = vpack.c.b16 %v696, %v695
        %v740 = vpack.c.b16 %v698, %v697
        %v741 = vpack.c.b16 %v700, %v699
        %v742 = vpack.c.b16 %v702, %v701
        %v743 = vpack.c.b16 %v704, %v703
        %v744 = vpack.c.b16 %v706, %v705
        %v745 = vpack.c.b16 %v708, %v707
        %v746 = vpack.c.b16 %v710, %v709
        %v747 = vpack.c.b16 %v712, %v711
        %v748 = vpack.c.b16 %v714, %v713
        %v749 = vpack.c.b16 %v716, %v715
        %v750 = vpack.c.b16 %v718, %v717
        %v751 = vpack.c.b16 %v720, %v719
        %v752 = vpack.c.b16 %v722, %v721
        %v753 = vpack.c.b16 %v724, %v723
        %v754 = vpack.c.b16 %v726, %v725
        %v755 = vpack.c.b16 %v728, %v727
        %v756 = vpack.c.b16 %v730, %v729
        %v757 = vpack.c.b16 %v732, %v731
        %v758 = vpack.c.b16 %v734, %v733
        %783 = vmatprep.subr.bf16.mxu0 0
        %784 = vmatpush1.bf16.msra.mxu0 %v735
        %785 = vmatprep.subr.bf16.mxu0 0
        %786 = vmatpush1.bf16.msra.mxu0 %v736
        %787 = vmatprep.subr.bf16.mxu0 0
        %788 = vmatpush1.bf16.msra.mxu0 %v737
        %789 = vmatprep.subr.bf16.mxu0 0
        %790 = vmatpush1.bf16.msra.mxu0 %v738
        %791 = vmatprep.subr.bf16.mxu0 0
        %792 = vmatpush1.bf16.msra.mxu0 %v739
        %793 = vmatprep.subr.bf16.mxu0 0
        %794 = vmatpush1.bf16.msra.mxu0 %v740
        %795 = vmatprep.subr.bf16.mxu0 0
        %796 = vmatpush1.bf16.msra.mxu0 %v741
        %797 = vmatprep.subr.bf16.mxu0 0
        %798 = vmatpush1.bf16.msra.mxu0 %v742
        %799 = vmatprep.subr.bf16.mxu0 0
        %800 = vmatpush1.bf16.msra.mxu0 %v743
        %801 = vmatprep.subr.bf16.mxu0 0
        %802 = vmatpush1.bf16.msra.mxu0 %v744
        %803 = vmatprep.subr.bf16.mxu0 0
        %804 = vmatpush1.bf16.msra.mxu0 %v745
        %805 = vmatprep.subr.bf16.mxu0 0
        %806 = vmatpush1.bf16.msra.mxu0 %v746
        %807 = vmatprep.subr.bf16.mxu0 0
        %808 = vmatpush1.bf16.msra.mxu0 %v747
        %809 = vmatprep.subr.bf16.mxu0 0
        %810 = vmatpush1.bf16.msra.mxu0 %v748
        %811 = vmatprep.subr.bf16.mxu0 0
        %812 = vmatpush1.bf16.msra.mxu0 %v749
        %813 = vmatprep.subr.bf16.mxu0 0
        %814 = vmatpush1.bf16.msra.mxu0 %v750
        %815 = vmatprep.mubr.bf16.mxu0 %v630
        %816 = vmatmul.mubr.bf16.gmra.mrb[0].mxu0 %v629
        %v817 = vpop.f32.mrb[0].mxu0
        %v818 = vadd.f32 %v637, %v817
        %v819 = vpop.f32.mrb[0].mxu0
        %v820 = vpop.f32.mrb[0].mxu0
        %v821 = vadd.f32 %v637, %v820
        %v822 = vpop.f32.mrb[0].mxu0
        %823 = vdwg.mxu0
        %824 = vmatprep.subr.bf16.mxu0 0
        %825 = vmatpush1.bf16.msra.mxu0 %v751
        %826 = vmatprep.subr.bf16.mxu0 0
        %827 = vmatpush1.bf16.msra.mxu0 %v752
        %828 = vmatprep.subr.bf16.mxu0 0
        %829 = vmatpush1.bf16.msra.mxu0 %v753
        %830 = vmatprep.subr.bf16.mxu0 0
        %831 = vmatpush1.bf16.msra.mxu0 %v754
        %832 = vmatprep.subr.bf16.mxu0 0
        %833 = vmatpush1.bf16.msra.mxu0 %v755
        %834 = vmatprep.subr.bf16.mxu0 0
        %835 = vmatpush1.bf16.msra.mxu0 %v756
        %836 = vmatprep.subr.bf16.mxu0 0
        %837 = vmatpush1.bf16.msra.mxu0 %v757
        %838 = vmatprep.subr.bf16.mxu0 0
        %839 = vmatpush1.bf16.msra.mxu0 %v758
        %840 = vmatprep.subr.bf16.mxu0 0
        %841 = vmatpush1.bf16.msra.mxu0 0
        %842 = vmatprep.subr.bf16.mxu0 0
        %843 = vmatpush1.bf16.msra.mxu0 0
        %844 = vmatprep.subr.bf16.mxu0 0
        %845 = vmatpush1.bf16.msra.mxu0 0
        %846 = vmatprep.subr.bf16.mxu0 0
        %847 = vmatpush1.bf16.msra.mxu0 0
        %848 = vmatprep.subr.bf16.mxu0 0
        %849 = vmatpush1.bf16.msra.mxu0 0
        %850 = vmatprep.subr.bf16.mxu0 0
        %851 = vmatpush1.bf16.msra.mxu0 0
        %852 = vmatprep.subr.bf16.mxu0 0
        %853 = vmatpush1.bf16.msra.mxu0 0
        %854 = vmatprep.subr.bf16.mxu0 0
        %855 = vmatpush1.bf16.msra.mxu0 0
        %856 = vmatprep.mubr.bf16.mxu0 0
        %857 = vmatmul.mubr.bf16.gmra.mrb[0].mxu0 %v631
        %v858 = vpop.f32.mrb[0].mxu0
        %v859 = vadd.f32 %v818, %v858
        %v860 = vpop.f32.mrb[0].mxu0
        %v861 = vpop.f32.mrb[0].mxu0
        %v862 = vadd.f32 %v821, %v861
        %v863 = vpop.f32.mrb[0].mxu0
        %864 = vdwg.mxu0
        %v865 = vmax.f32 %v859, 0.0
        %v866 = vmax.f32 %v862, 0.0
        %v867 = vrot.slane %v865, 7
        %v868 = vrot.slane %v866, 7
        %v869 = vsel %vm415, %v867, %v868
        %v870 = vsel %vm415, %v868, %v867
        %v871 = vsel %vm419, 0.0, %v870
        %v872 = vsel %vm420, 0.0, %v869
        %v873 = vrot.slane %v865, 1
        %v874 = vrot.slane %v866, 1
        %v875 = vsel %vm425, %v873, %v874
        %v876 = vsel %vm425, %v874, %v873
        %v877 = vsel %vm428, 0.0, %v875
        %v878 = vsel %vm429, 0.0, %v876
        %s879 = scalar_lea.vmem [#allocation2], 192
        %v880 = vld [vmem:[%s879] sm:$0xf]
        %v881 = vld [vmem:[%s879 + $0x4] sm:$0xf]
        %v882 = vld [vmem:[%s879 + $0x8] sm:$0xf]
        %v883 = vld [vmem:[%s879 + $0xc] sm:$0xf]
        %v884 = vld [vmem:[%s879 + $0x10] sm:$0xf]
        %v885 = vld [vmem:[%s879 + $0x14] sm:$0xf]
        %v886 = vld [vmem:[%s879 + $0x18] sm:$0xf]
        %v887 = vld [vmem:[%s879 + $0x1c] sm:$0xf]
        %v888 = vld [vmem:[%s879 + $0x20] sm:$0xf]
        %v889 = vld [vmem:[%s879 + $0x24] sm:$0xf]
        %v890 = vld [vmem:[%s879 + $0x28] sm:$0xf]
        %v891 = vld [vmem:[%s879 + $0x2c] sm:$0xf]
        %v892 = vld [vmem:[%s879 + $0x30] sm:$0xf]
        %v893 = vld [vmem:[%s879 + $0x34] sm:$0xf]
        %v894 = vld [vmem:[%s879 + $0x38] sm:$0xf]
        %v895 = vld [vmem:[%s879 + $0x3c] sm:$0xf]
        %v896 = vld [vmem:[%s879 + $0x40] sm:$0xf]
        %v897 = vld [vmem:[%s879 + $0x44] sm:$0xf]
        %v898 = vld [vmem:[%s879 + $0x48] sm:$0xf]
        %v899 = vld [vmem:[%s879 + $0x4c] sm:$0xf]
        %v900 = vld [vmem:[%s879 + $0x50] sm:$0xf]
        %v901 = vld [vmem:[%s879 + $0x54] sm:$0xf]
        %v902 = vld [vmem:[%s879 + $0x58] sm:$0xf]
        %v903 = vld [vmem:[%s879 + $0x5c] sm:$0xf]
        %v904 = vld [vmem:[%s879 + $0x60] sm:$0xf]
        %v905 = vld [vmem:[%s879 + $0x64] sm:$0xf]
        %v906 = vld [vmem:[%s879 + $0x68] sm:$0xf]
        %v907 = vld [vmem:[%s879 + $0x6c] sm:$0xf]
        %v908 = vld [vmem:[%s879 + $0x70] sm:$0xf]
        %v909 = vld [vmem:[%s879 + $0x74] sm:$0xf]
        %v910 = vld [vmem:[%s879 + $0x78] sm:$0xf]
        %v911 = vld [vmem:[%s879 + $0x7c] sm:$0xf]
        %v912 = vld [vmem:[%s879 + $0x80] sm:$0xf]
        %v913 = vld [vmem:[%s879 + $0x84] sm:$0xf]
        %v914 = vld [vmem:[%s879 + $0x88] sm:$0xf]
        %v915 = vld [vmem:[%s879 + $0x8c] sm:$0xf]
        %v916 = vld [vmem:[%s879 + $0x90] sm:$0xf]
        %v917 = vld [vmem:[%s879 + $0x94] sm:$0xf]
        %v918 = vld [vmem:[%s879 + $0x98] sm:$0xf]
        %v919 = vld [vmem:[%s879 + $0x9c] sm:$0xf]
        %v920 = vld [vmem:[%s879 + $0xa0] sm:$0xf]
        %v921 = vld [vmem:[%s879 + $0xa4] sm:$0xf]
        %v922 = vld [vmem:[%s879 + $0xa8] sm:$0xf]
        %v923 = vld [vmem:[%s879 + $0xac] sm:$0xf]
        %v924 = vld [vmem:[%s879 + $0xb0] sm:$0xf]
        %v925 = vld [vmem:[%s879 + $0xb4] sm:$0xf]
        %v926 = vld [vmem:[%s879 + $0xb8] sm:$0xf]
        %v927 = vld [vmem:[%s879 + $0xbc] sm:$0xf]
        %v928 = vpack.c.bf16 %v872, %v871
        %v929 = vpack.c.bf16 %v866, %v865
        %v930 = vpack.c.bf16 %v878, %v877
        %s931 = scalar_lea.vmem %s5, 1
        %v932 = vld [vmem:[%s931] sm:$0x1]
        %v934 = vlaneseq
        %v935 = vshrl.u32 %v934, 7
        %v936 = vsub.s32 0, %v935
        %v937 = vrot.slane %v932, %v936
        %v987 = vunpack.c.l.b16 %v880
        %v988 = vunpack.c.l.b16 %v881
        %v989 = vunpack.c.l.b16 %v882
        %v990 = vunpack.c.l.b16 %v883
        %v991 = vunpack.c.l.b16 %v884
        %v992 = vunpack.c.l.b16 %v885
        %v993 = vunpack.c.l.b16 %v886
        %v994 = vunpack.c.l.b16 %v887
        %v995 = vunpack.c.l.b16 %v888
        %v996 = vunpack.c.l.b16 %v889
        %v997 = vunpack.c.l.b16 %v890
        %v998 = vunpack.c.l.b16 %v891
        %v999 = vunpack.c.l.b16 %v892
        %v1000 = vunpack.c.l.b16 %v893
        %v1001 = vunpack.c.l.b16 %v894
        %v1002 = vunpack.c.l.b16 %v895
        %v1003 = vunpack.c.l.b16 %v896
        %v1004 = vunpack.c.l.b16 %v897
        %v1005 = vunpack.c.l.b16 %v898
        %v1006 = vunpack.c.l.b16 %v899
        %v1007 = vunpack.c.l.b16 %v900
        %v1008 = vunpack.c.l.b16 %v901
        %v1009 = vunpack.c.l.b16 %v902
        %v1010 = vunpack.c.l.b16 %v903
        %v1011 = vunpack.c.l.b16 %v904
        %v1012 = vunpack.c.l.b16 %v905
        %v1013 = vunpack.c.l.b16 %v906
        %v1014 = vunpack.c.l.b16 %v907
        %v1015 = vunpack.c.l.b16 %v908
        %v1016 = vunpack.c.l.b16 %v909
        %v1017 = vunpack.c.l.b16 %v910
        %v1018 = vunpack.c.l.b16 %v911
        %v1019 = vunpack.c.l.b16 %v912
        %v1020 = vunpack.c.l.b16 %v913
        %v1021 = vunpack.c.l.b16 %v914
        %v1022 = vunpack.c.l.b16 %v915
        %v1023 = vunpack.c.l.b16 %v916
        %v1024 = vunpack.c.l.b16 %v917
        %v1025 = vunpack.c.l.b16 %v918
        %v1026 = vunpack.c.l.b16 %v919
        %v1027 = vunpack.c.l.b16 %v920
        %v1028 = vunpack.c.l.b16 %v921
        %v1029 = vunpack.c.l.b16 %v922
        %v1030 = vunpack.c.l.b16 %v923
        %v1031 = vunpack.c.l.b16 %v924
        %v1032 = vunpack.c.l.b16 %v925
        %v1033 = vunpack.c.l.b16 %v926
        %v1034 = vunpack.c.l.b16 %v927
        %v1035 = vpack.c.b16 %v988, %v987
        %v1036 = vpack.c.b16 %v990, %v989
        %v1037 = vpack.c.b16 %v992, %v991
        %v1038 = vpack.c.b16 %v994, %v993
        %v1039 = vpack.c.b16 %v996, %v995
        %v1040 = vpack.c.b16 %v998, %v997
        %v1041 = vpack.c.b16 %v1000, %v999
        %v1042 = vpack.c.b16 %v1002, %v1001
        %v1043 = vpack.c.b16 %v1004, %v1003
        %v1044 = vpack.c.b16 %v1006, %v1005
        %v1045 = vpack.c.b16 %v1008, %v1007
        %v1046 = vpack.c.b16 %v1010, %v1009
        %v1047 = vpack.c.b16 %v1012, %v1011
        %v1048 = vpack.c.b16 %v1014, %v1013
        %v1049 = vpack.c.b16 %v1016, %v1015
        %v1050 = vpack.c.b16 %v1018, %v1017
        %v1051 = vpack.c.b16 %v1020, %v1019
        %v1052 = vpack.c.b16 %v1022, %v1021
        %v1053 = vpack.c.b16 %v1024, %v1023
        %v1054 = vpack.c.b16 %v1026, %v1025
        %v1055 = vpack.c.b16 %v1028, %v1027
        %v1056 = vpack.c.b16 %v1030, %v1029
        %v1057 = vpack.c.b16 %v1032, %v1031
        %v1058 = vpack.c.b16 %v1034, %v1033
        %1083 = vmatprep.subr.bf16.mxu0 0
        %1084 = vmatpush1.bf16.msra.mxu0 %v1035
        %1085 = vmatprep.subr.bf16.mxu0 0
        %1086 = vmatpush1.bf16.msra.mxu0 %v1036
        %1087 = vmatprep.subr.bf16.mxu0 0
        %1088 = vmatpush1.bf16.msra.mxu0 %v1037
        %1089 = vmatprep.subr.bf16.mxu0 0
        %1090 = vmatpush1.bf16.msra.mxu0 %v1038
        %1091 = vmatprep.subr.bf16.mxu0 0
        %1092 = vmatpush1.bf16.msra.mxu0 %v1039
        %1093 = vmatprep.subr.bf16.mxu0 0
        %1094 = vmatpush1.bf16.msra.mxu0 %v1040
        %1095 = vmatprep.subr.bf16.mxu0 0
        %1096 = vmatpush1.bf16.msra.mxu0 %v1041
        %1097 = vmatprep.subr.bf16.mxu0 0
        %1098 = vmatpush1.bf16.msra.mxu0 %v1042
        %1099 = vmatprep.subr.bf16.mxu0 0
        %1100 = vmatpush1.bf16.msra.mxu0 %v1043
        %1101 = vmatprep.subr.bf16.mxu0 0
        %1102 = vmatpush1.bf16.msra.mxu0 %v1044
        %1103 = vmatprep.subr.bf16.mxu0 0
        %1104 = vmatpush1.bf16.msra.mxu0 %v1045
        %1105 = vmatprep.subr.bf16.mxu0 0
        %1106 = vmatpush1.bf16.msra.mxu0 %v1046
        %1107 = vmatprep.subr.bf16.mxu0 0
        %1108 = vmatpush1.bf16.msra.mxu0 %v1047
        %1109 = vmatprep.subr.bf16.mxu0 0
        %1110 = vmatpush1.bf16.msra.mxu0 %v1048
        %1111 = vmatprep.subr.bf16.mxu0 0
        %1112 = vmatpush1.bf16.msra.mxu0 %v1049
        %1113 = vmatprep.subr.bf16.mxu0 0
        %1114 = vmatpush1.bf16.msra.mxu0 %v1050
        %1115 = vmatprep.mubr.bf16.mxu0 %v929
        %1116 = vmatmul.mubr.bf16.gmra.mrb[0].mxu0 %v928
        %v1117 = vpop.f32.mrb[0].mxu0
        %v1118 = vadd.f32 %v937, %v1117
        %v1119 = vpop.f32.mrb[0].mxu0
        %v1120 = vpop.f32.mrb[0].mxu0
        %v1121 = vadd.f32 %v937, %v1120
        %v1122 = vpop.f32.mrb[0].mxu0
        %1123 = vdwg.mxu0
        %1124 = vmatprep.subr.bf16.mxu0 0
        %1125 = vmatpush1.bf16.msra.mxu0 %v1051
        %1126 = vmatprep.subr.bf16.mxu0 0
        %1127 = vmatpush1.bf16.msra.mxu0 %v1052
        %1128 = vmatprep.subr.bf16.mxu0 0
        %1129 = vmatpush1.bf16.msra.mxu0 %v1053
        %1130 = vmatprep.subr.bf16.mxu0 0
        %1131 = vmatpush1.bf16.msra.mxu0 %v1054
        %1132 = vmatprep.subr.bf16.mxu0 0
        %1133 = vmatpush1.bf16.msra.mxu0 %v1055
        %1134 = vmatprep.subr.bf16.mxu0 0
        %1135 = vmatpush1.bf16.msra.mxu0 %v1056
        %1136 = vmatprep.subr.bf16.mxu0 0
        %1137 = vmatpush1.bf16.msra.mxu0 %v1057
        %1138 = vmatprep.subr.bf16.mxu0 0
        %1139 = vmatpush1.bf16.msra.mxu0 %v1058
        %1140 = vmatprep.subr.bf16.mxu0 0
        %1141 = vmatpush1.bf16.msra.mxu0 0
        %1142 = vmatprep.subr.bf16.mxu0 0
        %1143 = vmatpush1.bf16.msra.mxu0 0
        %1144 = vmatprep.subr.bf16.mxu0 0
        %1145 = vmatpush1.bf16.msra.mxu0 0
        %1146 = vmatprep.subr.bf16.mxu0 0
        %1147 = vmatpush1.bf16.msra.mxu0 0
        %1148 = vmatprep.subr.bf16.mxu0 0
        %1149 = vmatpush1.bf16.msra.mxu0 0
        %1150 = vmatprep.subr.bf16.mxu0 0
        %1151 = vmatpush1.bf16.msra.mxu0 0
        %1152 = vmatprep.subr.bf16.mxu0 0
        %1153 = vmatpush1.bf16.msra.mxu0 0
        %1154 = vmatprep.subr.bf16.mxu0 0
        %1155 = vmatpush1.bf16.msra.mxu0 0
        %1156 = vmatprep.mubr.bf16.mxu0 0
        %1157 = vmatmul.mubr.bf16.gmra.mrb[0].mxu0 %v930
        %v1158 = vpop.f32.mrb[0].mxu0
        %v1159 = vadd.f32 %v1118, %v1158
        %v1160 = vpop.f32.mrb[0].mxu0
        %v1161 = vpop.f32.mrb[0].mxu0
        %v1162 = vadd.f32 %v1121, %v1161
        %v1163 = vpop.f32.mrb[0].mxu0
        %1164 = vdwg.mxu0
        %v1165 = vmax.f32 %v1159, 0.0
        %v1166 = vmax.f32 %v1162, 0.0
        %v1167 = vrot.slane %v1165, 7
        %v1168 = vrot.slane %v1166, 7
        %v1169 = vsel %vm415, %v1167, %v1168
        %v1170 = vsel %vm415, %v1168, %v1167
        %v1171 = vsel %vm419, 0.0, %v1170
        %v1172 = vsel %vm420, 0.0, %v1169
        %v1173 = vrot.slane %v1165, 1
        %v1174 = vrot.slane %v1166, 1
        %v1175 = vsel %vm425, %v1173, %v1174
        %v1176 = vsel %vm425, %v1174, %v1173
        %v1177 = vsel %vm428, 0.0, %v1175
        %v1178 = vsel %vm429, 0.0, %v1176
        %s1179 = scalar_lea.vmem [#allocation2], 384
        %v1180 = vld [vmem:[%s1179] sm:$0xf]
        %v1181 = vld [vmem:[%s1179 + $0x4] sm:$0xf]
        %v1182 = vld [vmem:[%s1179 + $0x8] sm:$0xf]
        %v1183 = vld [vmem:[%s1179 + $0xc] sm:$0xf]
        %v1184 = vld [vmem:[%s1179 + $0x10] sm:$0xf]
        %v1185 = vld [vmem:[%s1179 + $0x14] sm:$0xf]
        %v1186 = vld [vmem:[%s1179 + $0x18] sm:$0xf]
        %v1187 = vld [vmem:[%s1179 + $0x1c] sm:$0xf]
        %v1188 = vld [vmem:[%s1179 + $0x20] sm:$0xf]
        %v1189 = vld [vmem:[%s1179 + $0x24] sm:$0xf]
        %v1190 = vld [vmem:[%s1179 + $0x28] sm:$0xf]
        %v1191 = vld [vmem:[%s1179 + $0x2c] sm:$0xf]
        %v1192 = vld [vmem:[%s1179 + $0x30] sm:$0xf]
        %v1193 = vld [vmem:[%s1179 + $0x34] sm:$0xf]
        %v1194 = vld [vmem:[%s1179 + $0x38] sm:$0xf]
        %v1195 = vld [vmem:[%s1179 + $0x3c] sm:$0xf]
        %v1196 = vld [vmem:[%s1179 + $0x40] sm:$0xf]
        %v1197 = vld [vmem:[%s1179 + $0x44] sm:$0xf]
        %v1198 = vld [vmem:[%s1179 + $0x48] sm:$0xf]
        %v1199 = vld [vmem:[%s1179 + $0x4c] sm:$0xf]
        %v1200 = vld [vmem:[%s1179 + $0x50] sm:$0xf]
        %v1201 = vld [vmem:[%s1179 + $0x54] sm:$0xf]
        %v1202 = vld [vmem:[%s1179 + $0x58] sm:$0xf]
        %v1203 = vld [vmem:[%s1179 + $0x5c] sm:$0xf]
        %v1204 = vld [vmem:[%s1179 + $0x60] sm:$0xf]
        %v1205 = vld [vmem:[%s1179 + $0x64] sm:$0xf]
        %v1206 = vld [vmem:[%s1179 + $0x68] sm:$0xf]
        %v1207 = vld [vmem:[%s1179 + $0x6c] sm:$0xf]
        %v1208 = vld [vmem:[%s1179 + $0x70] sm:$0xf]
        %v1209 = vld [vmem:[%s1179 + $0x74] sm:$0xf]
        %v1210 = vld [vmem:[%s1179 + $0x78] sm:$0xf]
        %v1211 = vld [vmem:[%s1179 + $0x7c] sm:$0xf]
        %v1212 = vld [vmem:[%s1179 + $0x80] sm:$0xf]
        %v1213 = vld [vmem:[%s1179 + $0x84] sm:$0xf]
        %v1214 = vld [vmem:[%s1179 + $0x88] sm:$0xf]
        %v1215 = vld [vmem:[%s1179 + $0x8c] sm:$0xf]
        %v1216 = vld [vmem:[%s1179 + $0x90] sm:$0xf]
        %v1217 = vld [vmem:[%s1179 + $0x94] sm:$0xf]
        %v1218 = vld [vmem:[%s1179 + $0x98] sm:$0xf]
        %v1219 = vld [vmem:[%s1179 + $0x9c] sm:$0xf]
        %v1220 = vld [vmem:[%s1179 + $0xa0] sm:$0xf]
        %v1221 = vld [vmem:[%s1179 + $0xa4] sm:$0xf]
        %v1222 = vld [vmem:[%s1179 + $0xa8] sm:$0xf]
        %v1223 = vld [vmem:[%s1179 + $0xac] sm:$0xf]
        %v1224 = vld [vmem:[%s1179 + $0xb0] sm:$0xf]
        %v1225 = vld [vmem:[%s1179 + $0xb4] sm:$0xf]
        %v1226 = vld [vmem:[%s1179 + $0xb8] sm:$0xf]
        %v1227 = vld [vmem:[%s1179 + $0xbc] sm:$0xf]
        %v1228 = vpack.c.bf16 %v1172, %v1171
        %v1229 = vpack.c.bf16 %v1166, %v1165
        %v1230 = vpack.c.bf16 %v1178, %v1177
        %s1231 = scalar_lea.vmem %s5, 2
        %v1232 = vld [vmem:[%s1231] sm:$0x1]
        %v1234 = vlaneseq
        %v1235 = vshrl.u32 %v1234, 7
        %v1236 = vsub.s32 0, %v1235
        %v1237 = vrot.slane %v1232, %v1236
        %v1287 = vunpack.c.l.b16 %v1180
        %v1288 = vunpack.c.l.b16 %v1181
        %v1289 = vunpack.c.l.b16 %v1182
        %v1290 = vunpack.c.l.b16 %v1183
        %v1291 = vunpack.c.l.b16 %v1184
        %v1292 = vunpack.c.l.b16 %v1185
        %v1293 = vunpack.c.l.b16 %v1186
        %v1294 = vunpack.c.l.b16 %v1187
        %v1295 = vunpack.c.l.b16 %v1188
        %v1296 = vunpack.c.l.b16 %v1189
        %v1297 = vunpack.c.l.b16 %v1190
        %v1298 = vunpack.c.l.b16 %v1191
        %v1299 = vunpack.c.l.b16 %v1192
        %v1300 = vunpack.c.l.b16 %v1193
        %v1301 = vunpack.c.l.b16 %v1194
        %v1302 = vunpack.c.l.b16 %v1195
        %v1303 = vunpack.c.l.b16 %v1196
        %v1304 = vunpack.c.l.b16 %v1197
        %v1305 = vunpack.c.l.b16 %v1198
        %v1306 = vunpack.c.l.b16 %v1199
        %v1307 = vunpack.c.l.b16 %v1200
        %v1308 = vunpack.c.l.b16 %v1201
        %v1309 = vunpack.c.l.b16 %v1202
        %v1310 = vunpack.c.l.b16 %v1203
        %v1311 = vunpack.c.l.b16 %v1204
        %v1312 = vunpack.c.l.b16 %v1205
        %v1313 = vunpack.c.l.b16 %v1206
        %v1314 = vunpack.c.l.b16 %v1207
        %v1315 = vunpack.c.l.b16 %v1208
        %v1316 = vunpack.c.l.b16 %v1209
        %v1317 = vunpack.c.l.b16 %v1210
        %v1318 = vunpack.c.l.b16 %v1211
        %v1319 = vunpack.c.l.b16 %v1212
        %v1320 = vunpack.c.l.b16 %v1213
        %v1321 = vunpack.c.l.b16 %v1214
        %v1322 = vunpack.c.l.b16 %v1215
        %v1323 = vunpack.c.l.b16 %v1216
        %v1324 = vunpack.c.l.b16 %v1217
        %v1325 = vunpack.c.l.b16 %v1218
        %v1326 = vunpack.c.l.b16 %v1219
        %v1327 = vunpack.c.l.b16 %v1220
        %v1328 = vunpack.c.l.b16 %v1221
        %v1329 = vunpack.c.l.b16 %v1222
        %v1330 = vunpack.c.l.b16 %v1223
        %v1331 = vunpack.c.l.b16 %v1224
        %v1332 = vunpack.c.l.b16 %v1225
        %v1333 = vunpack.c.l.b16 %v1226
        %v1334 = vunpack.c.l.b16 %v1227
        %v1335 = vpack.c.b16 %v1288, %v1287
        %v1336 = vpack.c.b16 %v1290, %v1289
        %v1337 = vpack.c.b16 %v1292, %v1291
        %v1338 = vpack.c.b16 %v1294, %v1293
        %v1339 = vpack.c.b16 %v1296, %v1295
        %v1340 = vpack.c.b16 %v1298, %v1297
        %v1341 = vpack.c.b16 %v1300, %v1299
        %v1342 = vpack.c.b16 %v1302, %v1301
        %v1343 = vpack.c.b16 %v1304, %v1303
        %v1344 = vpack.c.b16 %v1306, %v1305
        %v1345 = vpack.c.b16 %v1308, %v1307
        %v1346 = vpack.c.b16 %v1310, %v1309
        %v1347 = vpack.c.b16 %v1312, %v1311
        %v1348 = vpack.c.b16 %v1314, %v1313
        %v1349 = vpack.c.b16 %v1316, %v1315
        %v1350 = vpack.c.b16 %v1318, %v1317
        %v1351 = vpack.c.b16 %v1320, %v1319
        %v1352 = vpack.c.b16 %v1322, %v1321
        %v1353 = vpack.c.b16 %v1324, %v1323
        %v1354 = vpack.c.b16 %v1326, %v1325
        %v1355 = vpack.c.b16 %v1328, %v1327
        %v1356 = vpack.c.b16 %v1330, %v1329
        %v1357 = vpack.c.b16 %v1332, %v1331
        %v1358 = vpack.c.b16 %v1334, %v1333
        %1383 = vmatprep.subr.bf16.mxu0 0
        %1384 = vmatpush1.bf16.msra.mxu0 %v1335
        %1385 = vmatprep.subr.bf16.mxu0 0
        %1386 = vmatpush1.bf16.msra.mxu0 %v1336
        %1387 = vmatprep.subr.bf16.mxu0 0
        %1388 = vmatpush1.bf16.msra.mxu0 %v1337
        %1389 = vmatprep.subr.bf16.mxu0 0
        %1390 = vmatpush1.bf16.msra.mxu0 %v1338
        %1391 = vmatprep.subr.bf16.mxu0 0
        %1392 = vmatpush1.bf16.msra.mxu0 %v1339
        %1393 = vmatprep.subr.bf16.mxu0 0
        %1394 = vmatpush1.bf16.msra.mxu0 %v1340
        %1395 = vmatprep.subr.bf16.mxu0 0
        %1396 = vmatpush1.bf16.msra.mxu0 %v1341
        %1397 = vmatprep.subr.bf16.mxu0 0
        %1398 = vmatpush1.bf16.msra.mxu0 %v1342
        %1399 = vmatprep.subr.bf16.mxu0 0
        %1400 = vmatpush1.bf16.msra.mxu0 %v1343
        %1401 = vmatprep.subr.bf16.mxu0 0
        %1402 = vmatpush1.bf16.msra.mxu0 %v1344
        %1403 = vmatprep.subr.bf16.mxu0 0
        %1404 = vmatpush1.bf16.msra.mxu0 %v1345
        %1405 = vmatprep.subr.bf16.mxu0 0
        %1406 = vmatpush1.bf16.msra.mxu0 %v1346
        %1407 = vmatprep.subr.bf16.mxu0 0
        %1408 = vmatpush1.bf16.msra.mxu0 %v1347
        %1409 = vmatprep.subr.bf16.mxu0 0
        %1410 = vmatpush1.bf16.msra.mxu0 %v1348
        %1411 = vmatprep.subr.bf16.mxu0 0
        %1412 = vmatpush1.bf16.msra.mxu0 %v1349
        %1413 = vmatprep.subr.bf16.mxu0 0
        %1414 = vmatpush1.bf16.msra.mxu0 %v1350
        %1415 = vmatprep.mubr.bf16.mxu0 %v1229
        %1416 = vmatmul.mubr.bf16.gmra.mrb[0].mxu0 %v1228
        %v1417 = vpop.f32.mrb[0].mxu0
        %v1418 = vadd.f32 %v1237, %v1417
        %v1419 = vpop.f32.mrb[0].mxu0
        %v1420 = vpop.f32.mrb[0].mxu0
        %v1421 = vadd.f32 %v1237, %v1420
        %v1422 = vpop.f32.mrb[0].mxu0
        %1423 = vdwg.mxu0
        %1424 = vmatprep.subr.bf16.mxu0 0
        %1425 = vmatpush1.bf16.msra.mxu0 %v1351
        %1426 = vmatprep.subr.bf16.mxu0 0
        %1427 = vmatpush1.bf16.msra.mxu0 %v1352
        %1428 = vmatprep.subr.bf16.mxu0 0
        %1429 = vmatpush1.bf16.msra.mxu0 %v1353
        %1430 = vmatprep.subr.bf16.mxu0 0
        %1431 = vmatpush1.bf16.msra.mxu0 %v1354
        %1432 = vmatprep.subr.bf16.mxu0 0
        %1433 = vmatpush1.bf16.msra.mxu0 %v1355
        %1434 = vmatprep.subr.bf16.mxu0 0
        %1435 = vmatpush1.bf16.msra.mxu0 %v1356
        %1436 = vmatprep.subr.bf16.mxu0 0
        %1437 = vmatpush1.bf16.msra.mxu0 %v1357
        %1438 = vmatprep.subr.bf16.mxu0 0
        %1439 = vmatpush1.bf16.msra.mxu0 %v1358
        %1440 = vmatprep.subr.bf16.mxu0 0
        %1441 = vmatpush1.bf16.msra.mxu0 0
        %1442 = vmatprep.subr.bf16.mxu0 0
        %1443 = vmatpush1.bf16.msra.mxu0 0
        %1444 = vmatprep.subr.bf16.mxu0 0
        %1445 = vmatpush1.bf16.msra.mxu0 0
        %1446 = vmatprep.subr.bf16.mxu0 0
        %1447 = vmatpush1.bf16.msra.mxu0 0
        %1448 = vmatprep.subr.bf16.mxu0 0
        %1449 = vmatpush1.bf16.msra.mxu0 0
        %1450 = vmatprep.subr.bf16.mxu0 0
        %1451 = vmatpush1.bf16.msra.mxu0 0
        %1452 = vmatprep.subr.bf16.mxu0 0
        %1453 = vmatpush1.bf16.msra.mxu0 0
        %1454 = vmatprep.subr.bf16.mxu0 0
        %1455 = vmatpush1.bf16.msra.mxu0 0
        %1456 = vmatprep.mubr.bf16.mxu0 0
        %1457 = vmatmul.mubr.bf16.gmra.mrb[0].mxu0 %v1230
        %v1458 = vpop.f32.mrb[0].mxu0
        %v1459 = vadd.f32 %v1418, %v1458
        %v1460 = vpop.f32.mrb[0].mxu0
        %v1461 = vpop.f32.mrb[0].mxu0
        %v1462 = vadd.f32 %v1421, %v1461
        %v1463 = vpop.f32.mrb[0].mxu0
        %1464 = vdwg.mxu0
        %v1465 = vmax.f32 %v1459, 0.0
        %v1466 = vmax.f32 %v1462, 0.0
        %v1468 = vsel %vm329, %v327, 0
        %v1471 = vsel %vm329, %v328, 0
        %1473 = vmatprep.subr.mxu0 0.0
        %1474 = vmatpush1.msra.mxu0 %v1465
        %1475 = vmatprep.subr.mxu0 0.0
        %1476 = vmatpush1.msra.mxu0 %v1466
        %1477 = vmatprep.subr.mxu0 0.0
        %1478 = vmatpush1.msra.mxu0 0.0
        %1479 = vmatprep.subr.mxu0 0.0
        %1480 = vmatpush1.msra.mxu0 0.0
        %1481 = vmatprep.subr.mxu0 0.0
        %1482 = vmatpush1.msra.mxu0 0.0
        %1483 = vmatprep.subr.mxu0 0.0
        %1484 = vmatpush1.msra.mxu0 0.0
        %1485 = vmatprep.subr.mxu0 0.0
        %1486 = vmatpush1.msra.mxu0 0.0
        %1487 = vmatprep.subr.mxu0 0.0
        %1488 = vmatpush1.msra.mxu0 0.0
        %1489 = vmatprep.subr.mxu0 0.0
        %1490 = vmatpush1.msra.mxu0 0.0
        %1491 = vmatprep.subr.mxu0 0.0
        %1492 = vmatpush1.msra.mxu0 0.0
        %1493 = vmatprep.subr.mxu0 0.0
        %1494 = vmatpush1.msra.mxu0 0.0
        %1495 = vmatprep.subr.mxu0 0.0
        %1496 = vmatpush1.msra.mxu0 0.0
        %1497 = vmatprep.subr.mxu0 0.0
        %1498 = vmatpush1.msra.mxu0 0.0
        %1499 = vmatprep.subr.mxu0 0.0
        %1500 = vmatpush1.msra.mxu0 0.0
        %1501 = vmatprep.subr.mxu0 0.0
        %1502 = vmatpush1.msra.mxu0 0.0
        %1503 = vmatprep.subr.mxu0 0.0
        %1504 = vmatpush1.msra.mxu0 0.0
        %1505 = vmatprep.subr.mxu0 0.0
        %1506 = vmatpush1.msra.mxu0 0.0
        %1507 = vmatprep.subr.mxu0 0.0
        %1508 = vmatpush1.msra.mxu0 0.0
        %1509 = vmatprep.subr.mxu0 0.0
        %1510 = vmatpush1.msra.mxu0 0.0
        %1511 = vmatprep.subr.mxu0 0.0
        %1512 = vmatpush1.msra.mxu0 0.0
        %1513 = vmatprep.subr.mxu0 0.0
        %1514 = vmatpush1.msra.mxu0 0.0
        %1515 = vmatprep.subr.mxu0 0.0
        %1516 = vmatpush1.msra.mxu0 0.0
        %1517 = vmatprep.subr.mxu0 0.0
        %1518 = vmatpush1.msra.mxu0 0.0
        %1519 = vmatprep.subr.mxu0 0.0
        %1520 = vmatpush1.msra.mxu0 0.0
        %1521 = vmatprep.subr.mxu0 0.0
        %1522 = vmatpush1.msra.mxu0 0.0
        %1523 = vmatprep.subr.mxu0 0.0
        %1524 = vmatpush1.msra.mxu0 0.0
        %1525 = vmatprep.subr.mxu0 0.0
        %1526 = vmatpush1.msra.mxu0 0.0
        %1527 = vmatprep.subr.mxu0 0.0
        %1528 = vmatpush1.msra.mxu0 0.0
        %1529 = vmatprep.subr.mxu0 0.0
        %1530 = vmatpush1.msra.mxu0 0.0
        %1531 = vmatprep.subr.mxu0 0.0
        %1532 = vmatpush1.msra.mxu0 0.0
        %1533 = vmatprep.subr.mxu0 0.0
        %1534 = vmatpush1.msra.mxu0 0.0
        %1535 = vmatprep.subr.mxu0 0.0
        %1536 = vmatpush1.msra.mxu0 0.0
        %1537 = vmatprep.mubr.f32.mxu0 0.0
        %1538 = vmatmul.mubr.f32.gmra.mrb[0].mxu0 %v1468
        %v1539 = vpop.f32.mrb[0].mxu0
        %v1540 = vadd.f32 0.0, %v1539
        %v1541 = vpop.f32.mrb[0].mxu0
        %1542 = vmatprep.mubr.f32.mxu0 0.0
        %1543 = vmatmul.mubr.f32.gmra.mrb[0].mxu0 %v1471
        %v1544 = vpop.f32.mrb[0].mxu0
        %v1545 = vadd.f32 0.0, %v1544
        %v1546 = vpop.f32.mrb[0].mxu0
        %1547 = vdwg.mxu0
        %v1548 = vlaneseq
        %v1549 = vand.u32 %v1548, 127
        %vm1550 = vcmp.lt.s32.totalorder %v1549, 64
        %v1551 = vsel %vm1550, %v1465, %v1540
        %v1552 = vsel %vm1550, %v1466, %v1545
        %v1553 = vrot.slane %v1551, 7
        %v1554 = vrot.slane %v1552, 7
        %v1555 = vsel %vm415, %v1553, %v1554
        %v1556 = vsel %vm415, %v1554, %v1553
        %v1557 = vsel %vm419, 0.0, %v1556
        %v1558 = vsel %vm420, 0.0, %v1555
        %v1559 = vrot.slane %v1551, 1
        %v1560 = vrot.slane %v1552, 1
        %v1561 = vsel %vm425, %v1559, %v1560
        %v1562 = vsel %vm425, %v1560, %v1559
        %v1563 = vsel %vm428, 0.0, %v1561
        %v1564 = vsel %vm429, 0.0, %v1562
        %v1565 = vld [vmem:[%s6] sm:$0xf]
        %v1566 = vld [vmem:[%s6 + $0x4] sm:$0xf]
        %v1567 = vld [vmem:[%s6 + $0x8] sm:$0xf]
        %v1568 = vld [vmem:[%s6 + $0xc] sm:$0xf]
        %v1569 = vld [vmem:[%s6 + $0x10] sm:$0xf]
        %v1570 = vld [vmem:[%s6 + $0x14] sm:$0xf]
        %v1571 = vld [vmem:[%s6 + $0x18] sm:$0xf]
        %v1572 = vld [vmem:[%s6 + $0x1c] sm:$0xf]
        %v1573 = vld [vmem:[%s6 + $0x20] sm:$0xf]
        %v1574 = vld [vmem:[%s6 + $0x24] sm:$0xf]
        %v1575 = vld [vmem:[%s6 + $0x28] sm:$0xf]
        %v1576 = vld [vmem:[%s6 + $0x2c] sm:$0xf]
        %v1577 = vld [vmem:[%s6 + $0x30] sm:$0xf]
        %v1578 = vld [vmem:[%s6 + $0x34] sm:$0xf]
        %v1579 = vld [vmem:[%s6 + $0x38] sm:$0xf]
        %v1580 = vld [vmem:[%s6 + $0x3c] sm:$0xf]
        %v1581 = vld [vmem:[%s6 + $0x40] sm:$0xf]
        %v1582 = vld [vmem:[%s6 + $0x44] sm:$0xf]
        %v1583 = vld [vmem:[%s6 + $0x48] sm:$0xf]
        %v1584 = vld [vmem:[%s6 + $0x4c] sm:$0xf]
        %v1585 = vld [vmem:[%s6 + $0x50] sm:$0xf]
        %v1586 = vld [vmem:[%s6 + $0x54] sm:$0xf]
        %v1587 = vld [vmem:[%s6 + $0x58] sm:$0xf]
        %v1588 = vld [vmem:[%s6 + $0x5c] sm:$0xf]
        %v1589 = vld [vmem:[%s6 + $0x60] sm:$0xf]
        %v1590 = vld [vmem:[%s6 + $0x64] sm:$0xf]
        %v1591 = vld [vmem:[%s6 + $0x68] sm:$0xf]
        %v1592 = vld [vmem:[%s6 + $0x6c] sm:$0xf]
        %v1593 = vld [vmem:[%s6 + $0x70] sm:$0xf]
        %v1594 = vld [vmem:[%s6 + $0x74] sm:$0xf]
        %v1595 = vld [vmem:[%s6 + $0x78] sm:$0xf]
        %v1596 = vld [vmem:[%s6 + $0x7c] sm:$0xf]
        %v1597 = vld [vmem:[%s6 + $0x80] sm:$0xf]
        %v1598 = vld [vmem:[%s6 + $0x84] sm:$0xf]
        %v1599 = vld [vmem:[%s6 + $0x88] sm:$0xf]
        %v1600 = vld [vmem:[%s6 + $0x8c] sm:$0xf]
        %v1601 = vld [vmem:[%s6 + $0x90] sm:$0xf]
        %v1602 = vld [vmem:[%s6 + $0x94] sm:$0xf]
        %v1603 = vld [vmem:[%s6 + $0x98] sm:$0xf]
        %v1604 = vld [vmem:[%s6 + $0x9c] sm:$0xf]
        %v1605 = vld [vmem:[%s6 + $0xa0] sm:$0xf]
        %v1606 = vld [vmem:[%s6 + $0xa4] sm:$0xf]
        %v1607 = vld [vmem:[%s6 + $0xa8] sm:$0xf]
        %v1608 = vld [vmem:[%s6 + $0xac] sm:$0xf]
        %v1609 = vld [vmem:[%s6 + $0xb0] sm:$0xf]
        %v1610 = vld [vmem:[%s6 + $0xb4] sm:$0xf]
        %v1611 = vld [vmem:[%s6 + $0xb8] sm:$0xf]
        %v1612 = vld [vmem:[%s6 + $0xbc] sm:$0xf]
        %v1613 = vpack.c.bf16 %v1558, %v1557
        %v1614 = vpack.c.bf16 %v1552, %v1551
        %v1615 = vpack.c.bf16 %v1564, %v1563
        %v1616 = vld [vmem:[%s7] sm:$0x1]
        %v1618 = vlaneseq
        %v1619 = vshrl.u32 %v1618, 7
        %v1620 = vsub.s32 0, %v1619
        %v1621 = vrot.slane %v1616, %v1620
        %v1671 = vunpack.c.l.b16 %v1565
        %v1672 = vunpack.c.l.b16 %v1566
        %v1673 = vunpack.c.l.b16 %v1567
        %v1674 = vunpack.c.l.b16 %v1568
        %v1675 = vunpack.c.l.b16 %v1569
        %v1676 = vunpack.c.l.b16 %v1570
        %v1677 = vunpack.c.l.b16 %v1571
        %v1678 = vunpack.c.l.b16 %v1572
        %v1679 = vunpack.c.l.b16 %v1573
        %v1680 = vunpack.c.l.b16 %v1574
        %v1681 = vunpack.c.l.b16 %v1575
        %v1682 = vunpack.c.l.b16 %v1576
        %v1683 = vunpack.c.l.b16 %v1577
        %v1684 = vunpack.c.l.b16 %v1578
        %v1685 = vunpack.c.l.b16 %v1579
        %v1686 = vunpack.c.l.b16 %v1580
        %v1687 = vunpack.c.l.b16 %v1581
        %v1688 = vunpack.c.l.b16 %v1582
        %v1689 = vunpack.c.l.b16 %v1583
        %v1690 = vunpack.c.l.b16 %v1584
        %v1691 = vunpack.c.l.b16 %v1585
        %v1692 = vunpack.c.l.b16 %v1586
        %v1693 = vunpack.c.l.b16 %v1587
        %v1694 = vunpack.c.l.b16 %v1588
        %v1695 = vunpack.c.l.b16 %v1589
        %v1696 = vunpack.c.l.b16 %v1590
        %v1697 = vunpack.c.l.b16 %v1591
        %v1698 = vunpack.c.l.b16 %v1592
        %v1699 = vunpack.c.l.b16 %v1593
        %v1700 = vunpack.c.l.b16 %v1594
        %v1701 = vunpack.c.l.b16 %v1595
        %v1702 = vunpack.c.l.b16 %v1596
        %v1703 = vunpack.c.l.b16 %v1597
        %v1704 = vunpack.c.l.b16 %v1598
        %v1705 = vunpack.c.l.b16 %v1599
        %v1706 = vunpack.c.l.b16 %v1600
        %v1707 = vunpack.c.l.b16 %v1601
        %v1708 = vunpack.c.l.b16 %v1602
        %v1709 = vunpack.c.l.b16 %v1603
        %v1710 = vunpack.c.l.b16 %v1604
        %v1711 = vunpack.c.l.b16 %v1605
        %v1712 = vunpack.c.l.b16 %v1606
        %v1713 = vunpack.c.l.b16 %v1607
        %v1714 = vunpack.c.l.b16 %v1608
        %v1715 = vunpack.c.l.b16 %v1609
        %v1716 = vunpack.c.l.b16 %v1610
        %v1717 = vunpack.c.l.b16 %v1611
        %v1718 = vunpack.c.l.b16 %v1612
        %v1719 = vpack.c.b16 %v1672, %v1671
        %v1720 = vpack.c.b16 %v1674, %v1673
        %v1721 = vpack.c.b16 %v1676, %v1675
        %v1722 = vpack.c.b16 %v1678, %v1677
        %v1723 = vpack.c.b16 %v1680, %v1679
        %v1724 = vpack.c.b16 %v1682, %v1681
        %v1725 = vpack.c.b16 %v1684, %v1683
        %v1726 = vpack.c.b16 %v1686, %v1685
        %v1727 = vpack.c.b16 %v1688, %v1687
        %v1728 = vpack.c.b16 %v1690, %v1689
        %v1729 = vpack.c.b16 %v1692, %v1691
        %v1730 = vpack.c.b16 %v1694, %v1693
        %v1731 = vpack.c.b16 %v1696, %v1695
        %v1732 = vpack.c.b16 %v1698, %v1697
        %v1733 = vpack.c.b16 %v1700, %v1699
        %v1734 = vpack.c.b16 %v1702, %v1701
        %v1735 = vpack.c.b16 %v1704, %v1703
        %v1736 = vpack.c.b16 %v1706, %v1705
        %v1737 = vpack.c.b16 %v1708, %v1707
        %v1738 = vpack.c.b16 %v1710, %v1709
        %v1739 = vpack.c.b16 %v1712, %v1711
        %v1740 = vpack.c.b16 %v1714, %v1713
        %v1741 = vpack.c.b16 %v1716, %v1715
        %v1742 = vpack.c.b16 %v1718, %v1717
        %1767 = vmatprep.subr.bf16.mxu0 0
        %1768 = vmatpush1.bf16.msra.mxu0 %v1719
        %1769 = vmatprep.subr.bf16.mxu0 0
        %1770 = vmatpush1.bf16.msra.mxu0 %v1720
        %1771 = vmatprep.subr.bf16.mxu0 0
        %1772 = vmatpush1.bf16.msra.mxu0 %v1721
        %1773 = vmatprep.subr.bf16.mxu0 0
        %1774 = vmatpush1.bf16.msra.mxu0 %v1722
        %1775 = vmatprep.subr.bf16.mxu0 0
        %1776 = vmatpush1.bf16.msra.mxu0 %v1723
        %1777 = vmatprep.subr.bf16.mxu0 0
        %1778 = vmatpush1.bf16.msra.mxu0 %v1724
        %1779 = vmatprep.subr.bf16.mxu0 0
        %1780 = vmatpush1.bf16.msra.mxu0 %v1725
        %1781 = vmatprep.subr.bf16.mxu0 0
        %1782 = vmatpush1.bf16.msra.mxu0 %v1726
        %1783 = vmatprep.subr.bf16.mxu0 0
        %1784 = vmatpush1.bf16.msra.mxu0 %v1727
        %1785 = vmatprep.subr.bf16.mxu0 0
        %1786 = vmatpush1.bf16.msra.mxu0 %v1728
        %1787 = vmatprep.subr.bf16.mxu0 0
        %1788 = vmatpush1.bf16.msra.mxu0 %v1729
        %1789 = vmatprep.subr.bf16.mxu0 0
        %1790 = vmatpush1.bf16.msra.mxu0 %v1730
        %1791 = vmatprep.subr.bf16.mxu0 0
        %1792 = vmatpush1.bf16.msra.mxu0 %v1731
        %1793 = vmatprep.subr.bf16.mxu0 0
        %1794 = vmatpush1.bf16.msra.mxu0 %v1732
        %1795 = vmatprep.subr.bf16.mxu0 0
        %1796 = vmatpush1.bf16.msra.mxu0 %v1733
        %1797 = vmatprep.subr.bf16.mxu0 0
        %1798 = vmatpush1.bf16.msra.mxu0 %v1734
        %1799 = vmatprep.mubr.bf16.mxu0 %v1614
        %1800 = vmatmul.mubr.bf16.gmra.mrb[0].mxu0 %v1613
        %v1801 = vpop.f32.mrb[0].mxu0
        %v1802 = vadd.f32 %v1621, %v1801
        %v1803 = vpop.f32.mrb[0].mxu0
        %v1804 = vpop.f32.mrb[0].mxu0
        %v1805 = vadd.f32 %v1621, %v1804
        %v1806 = vpop.f32.mrb[0].mxu0
        %1807 = vdwg.mxu0
        %1808 = vmatprep.subr.bf16.mxu0 0
        %1809 = vmatpush1.bf16.msra.mxu0 %v1735
        %1810 = vmatprep.subr.bf16.mxu0 0
        %1811 = vmatpush1.bf16.msra.mxu0 %v1736
        %1812 = vmatprep.subr.bf16.mxu0 0
        %1813 = vmatpush1.bf16.msra.mxu0 %v1737
        %1814 = vmatprep.subr.bf16.mxu0 0
        %1815 = vmatpush1.bf16.msra.mxu0 %v1738
        %1816 = vmatprep.subr.bf16.mxu0 0
        %1817 = vmatpush1.bf16.msra.mxu0 %v1739
        %1818 = vmatprep.subr.bf16.mxu0 0
        %1819 = vmatpush1.bf16.msra.mxu0 %v1740
        %1820 = vmatprep.subr.bf16.mxu0 0
        %1821 = vmatpush1.bf16.msra.mxu0 %v1741
        %1822 = vmatprep.subr.bf16.mxu0 0
        %1823 = vmatpush1.bf16.msra.mxu0 %v1742
        %1824 = vmatprep.subr.bf16.mxu0 0
        %1825 = vmatpush1.bf16.msra.mxu0 0
        %1826 = vmatprep.subr.bf16.mxu0 0
        %1827 = vmatpush1.bf16.msra.mxu0 0
        %1828 = vmatprep.subr.bf16.mxu0 0
        %1829 = vmatpush1.bf16.msra.mxu0 0
        %1830 = vmatprep.subr.bf16.mxu0 0
        %1831 = vmatpush1.bf16.msra.mxu0 0
        %1832 = vmatprep.subr.bf16.mxu0 0
        %1833 = vmatpush1.bf16.msra.mxu0 0
        %1834 = vmatprep.subr.bf16.mxu0 0
        %1835 = vmatpush1.bf16.msra.mxu0 0
        %1836 = vmatprep.subr.bf16.mxu0 0
        %1837 = vmatpush1.bf16.msra.mxu0 0
        %1838 = vmatprep.subr.bf16.mxu0 0
        %1839 = vmatpush1.bf16.msra.mxu0 0
        %1840 = vmatprep.mubr.bf16.mxu0 0
        %1841 = vmatmul.mubr.bf16.gmra.mrb[0].mxu0 %v1615
        %v1842 = vpop.f32.mrb[0].mxu0
        %v1843 = vadd.f32 %v1802, %v1842
        %v1844 = vpop.f32.mrb[0].mxu0
        %v1845 = vpop.f32.mrb[0].mxu0
        %v1846 = vadd.f32 %v1805, %v1845
        %v1847 = vpop.f32.mrb[0].mxu0
        %1848 = vdwg.mxu0
        %1849 = vst.msk [vmem:[%s320] sm:$0xff] %vm484, %v1843
        %1850 = vst.msk [vmem:[%s320 + $0x8] sm:$0xff] %vm484, %v1846
        %p1851 = scmp.lt.s32.totalorder %s20, 1
        %s1852 = scalar_select %p1851, %s20, 1
        %s1853 = smul.addr %s1852, 2
        %s1854 = smul.addr %s1853, 8
        %s1855 = scalar_lea.vmem %s8, %s1854
        // Predicated region
        $region57: #{tpu_custom_call.1} parent=51 // pred_check
          %p1856 = pneg %p211
        $region58: #{tpu_custom_call.1} parent=51 // pred_check_branch
          %1858 = sbr.rel (%p1856) target = $region60
        $region59: #{tpu_custom_call.1} parent=51 // pred_region
          _
        $region60: #{tpu_custom_call.1} parent=51 // pred_fallthru
          _
      $region52: #{tpu_custom_call.1} parent=5 // pred_fallthru
        _
      %p1859 = scmp.le.s32.totalorder 2, %s15
      // Predicated region
      $region61: #{tpu_custom_call.1} parent=5 // pred_check
        %p1860 = pneg %p1859
      $region62: #{tpu_custom_call.1} parent=5 // pred_check_branch
        %1862 = sbr.rel (%p1860) target = $region64
      $region63: #{tpu_custom_call.1} parent=5 // pred_region
        %s1863 = ssub.s32 %s15, 2
        // Predicated region
        $region65: #{tpu_custom_call.1} parent=63 // pred_check
          %p1864 = pneg %p217
        $region66: #{tpu_custom_call.1} parent=63 // pred_check_branch
          %1866 = sbr.rel (%p1864) target = $region68
        $region67: #{tpu_custom_call.1} parent=63 // pred_region
          %p1867 = scmp.lt.s32.totalorder %s21, 1
          %s1868 = scalar_select %p1867, %s21, 1
          %s1869 = smul.addr %s1868, 2
          %s1870 = smul.addr %s1869, 8
          %s1871 = scalar_lea.vmem %s8, %s1870
        $region68: #{tpu_custom_call.1} parent=63 // pred_fallthru
          _
      $region64: #{tpu_custom_call.1} parent=5 // pred_fallthru
        _
    $region6: #{tpu_custom_call.1} parent=1 // loop_footer
      %s19 = sadd.s32 1, %s15
    $region7: #{tpu_custom_call.1} parent=1 // loop_footer_branch
      %14 = sbr.rel target = $region3
    $region8: #{tpu_custom_call.1} parent=1 // loop_exit
      _
    %1872 = vsyncpa [#allocation3], 1
    %s1873 = scalar_lea.sflag [#allocation3], 1
    %1874 = vsyncpa %s1873, 1

</llo_original>
